<compile_context>
chip_gen: v7x
topology: tpu7x:2x2x1
jax: 0.10.0
libtpu: 0.0.40
codegen_flags: <defaults>
</compile_context>

<pallas_src>
import functools

import jax
import jax.numpy as jnp
import numpy as np
from jax.experimental import pallas as pl
from jax.experimental.pallas import tpu as pltpu


def _gru_block_kernel(tile_max_ref,
                      gi_r_ref, gi_z_ref, gi_n_ref,
                      whh_r_ref, whh_z_ref, whh_n_ref,
                      bhh_r_ref, bhh_z_ref, bhh_n_ref,
                      hout_ref, h_ref, *, t_block):
    """One (batch-tile, time-block) grid step of the GRU recurrence.

    Grid = (batch_tiles [parallel], time_blocks [arbitrary]).  The hidden
    state lives in a VMEM scratch buffer that persists across the sequential
    time axis and is re-zeroed whenever a new batch tile starts.
    """
    bi = pl.program_id(0)        # batch tile
    tb = pl.program_id(1)        # time block

    @pl.when(tb == 0)
    def _():
        h_ref[...] = jnp.zeros_like(h_ref)

    t0 = tb * t_block
    # Whole block lies beyond every sequence in this batch tile -> skip compute.
    past_end = t0 >= tile_max_ref[bi]

    @pl.when(past_end)
    def _():
        hout_ref[...] = jnp.zeros_like(hout_ref)

    @pl.when(jnp.logical_not(past_end))
    def _():
        # Hoist weight / bias loads out of the unrolled time loop.
        whh_r = whh_r_ref[...]
        whh_z = whh_z_ref[...]
        whh_n = whh_n_ref[...]
        bhh_r = bhh_r_ref[...]
        bhh_z = bhh_z_ref[...]
        bhh_n = bhh_n_ref[...]

        def step(t, h):
            # PyTorch GRU gate order: r, z, n   (gi already includes b_ih)
            gh_r = jnp.dot(h, whh_r, preferred_element_type=jnp.float32) + bhh_r
            gh_z = jnp.dot(h, whh_z, preferred_element_type=jnp.float32) + bhh_z
            gh_n = jnp.dot(h, whh_n, preferred_element_type=jnp.float32) + bhh_n
            r = jax.nn.sigmoid(gi_r_ref[t] + gh_r)
            z = jax.nn.sigmoid(gi_z_ref[t] + gh_z)
            n = jnp.tanh(gi_n_ref[t] + r * gh_n)
            h_new = (1.0 - z) * n + z * h
            hout_ref[t] = h_new
            return h_new

        h_ref[...] = jax.lax.fori_loop(0, t_block, step, h_ref[...], unroll=True)


def prosody_predictor_nonar(text_encoding, text_lengths, params, *,
                            t_block=32, n_block=8):
    """text_encoding: (N, T_enc, text_hidden) float32, batch-first (PyTorch layout).
       text_lengths:  python list / np array of ints.
       Returns (N, max(text_lengths), seq_prosody_hidden) float32."""
    text_encoding = jax.lax.stop_gradient(text_encoding)      # .detach()
    N, T_enc, Din = text_encoding.shape
    lens_list = [int(l) for l in text_lengths]
    T_out = max(lens_list)                                    # pad_packed max length
    H = params["w_hh_T"].shape[0]
    Dout = params["w_p_T"].shape[1]

    t_block = max(1, min(int(t_block), T_out))
    n_tt = pl.cdiv(T_out, t_block)
    T_pad = n_tt * t_block
    n_bt = pl.cdiv(N, n_block)
    N_pad = n_bt * n_block

    # ---- Hoisted input-gate GEMM: one (N*T, Din) x (Din, 3H) matmul ----------
    x = text_encoding[:, :T_out, :].astype(jnp.float32)
    gi = x.reshape(N * T_out, Din) @ params["w_ih_T"] + params["b_ih"]   # (N*T, 3H)
    # Split the r/z/n gates so each is a lane-aligned (.., H) slab; go
    # time-major and pad time/batch to block multiples.
    gi = gi.reshape(N, T_out, 3, H).transpose(2, 1, 0, 3)                # (3, T, N, H)
    gi = jnp.pad(gi, ((0, 0), (0, T_pad - T_out), (0, N_pad - N), (0, 0)))
    gi_r, gi_z, gi_n = gi[0], gi[1], gi[2]

    # ---- Per-gate recurrent weights / biases (lane aligned, resident) --------
    w_hh_T = params["w_hh_T"]                                  # (H, 3H)
    b_hh = params["b_hh"]                                      # (1, 3H)
    whh_r, whh_z, whh_n = w_hh_T[:, :H], w_hh_T[:, H:2 * H], w_hh_T[:, 2 * H:]
    bhh_r, bhh_z, bhh_n = b_hh[:, :H], b_hh[:, H:2 * H], b_hh[:, 2 * H:]

    # ---- Per-batch-tile max length (scalar prefetch -> SMEM) -----------------
    lens_np = np.zeros((N_pad,), np.int32)
    lens_np[:N] = np.asarray(lens_list, np.int32)
    tile_max = jnp.asarray(lens_np.reshape(n_bt, n_block).max(axis=1), jnp.int32)

    kernel = functools.partial(_gru_block_kernel, t_block=t_block)

    gi_spec = pl.BlockSpec((t_block, n_block, H), lambda bi, tb, mx: (tb, bi, 0))
    w_spec = pl.BlockSpec((H, H), lambda bi, tb, mx: (0, 0))
    b_spec = pl.BlockSpec((1, H), lambda bi, tb, mx: (0, 0))

    h_tm = pl.pallas_call(
        kernel,
        out_shape=jax.ShapeDtypeStruct((T_pad, N_pad, H), jnp.float32),
        grid_spec=pltpu.PrefetchScalarGridSpec(
            num_scalar_prefetch=1,
            grid=(n_bt, n_tt),
            in_specs=[gi_spec, gi_spec, gi_spec,
                      w_spec, w_spec, w_spec,
                      b_spec, b_spec, b_spec],
            out_specs=pl.BlockSpec((t_block, n_block, H),
                                   lambda bi, tb, mx: (tb, bi, 0)),
            scratch_shapes=[pltpu.VMEM((n_block, H), jnp.float32)],   # hidden state
        ),
        compiler_params=pltpu.CompilerParams(
            dimension_semantics=("parallel", "arbitrary")),           # batch x time
    )(tile_max, gi_r, gi_z, gi_n, whh_r, whh_z, whh_n, bhh_r, bhh_z, bhh_n)

    # ---- pad_packed zero-fill + hoisted projection: one (N*T, H) x (H, Dout) -
    h_bt = jnp.transpose(h_tm[:T_out, :N, :], (1, 0, 2))       # (N, T_out, H)
    lens_arr = jnp.asarray(lens_list, jnp.int32)
    mask = (jnp.arange(T_out)[None, :, None] < lens_arr[:, None, None])
    h_bt = h_bt * mask.astype(h_bt.dtype)
    out = h_bt.reshape(N * T_out, H) @ params["w_p_T"] + params["b_p"]
    return out.reshape(N, T_out, Dout)


def _reference(text_encoding, text_lengths, p):
    """Pure-JAX reference matching the PyTorch forward pass."""
    N, _, _ = text_encoding.shape
    T_out = int(max(int(l) for l in text_lengths))
    H = p["w_hh_T"].shape[0]
    x = jnp.transpose(text_encoding[:, :T_out, :], (1, 0, 2))        # (T, N, Din)

    def step(h, x_t):
        gi = x_t @ p["w_ih_T"] + p["b_ih"]
        gh = h @ p["w_hh_T"] + p["b_hh"]
        r = jax.nn.sigmoid(gi[:, :H] + gh[:, :H])
        z = jax.nn.sigmoid(gi[:, H:2 * H] + gh[:, H:2 * H])
        n = jnp.tanh(gi[:, 2 * H:] + r * gh[:, 2 * H:])
        h_new = (1.0 - z) * n + z * h
        return h_new, h_new

    h0 = jnp.zeros((N, H), jnp.float32)
    _, hs = jax.lax.scan(step, h0, x)                                # (T, N, H)
    hs = jnp.transpose(hs, (1, 0, 2))                                # (N, T, H)
    lens = jnp.asarray(text_lengths, jnp.int32)
    mask = (jnp.arange(T_out)[None, :, None] < lens[:, None, None]).astype(jnp.float32)
    hs = hs * mask
    return hs @ p["w_p_T"] + p["b_p"]


def make_params(key, text_hidden, prosody_predictor_dim, seq_prosody_hidden):
    """Deterministic synthetic parameters with the same shapes as the module."""
    H, Din, Dout = prosody_predictor_dim, text_hidden, seq_prosody_hidden
    ks = jax.random.split(key, 6)
    scale = 1.0 / np.sqrt(H)
    w_ih = jax.random.uniform(ks[0], (3 * H, Din), jnp.float32, -scale, scale)
    w_hh = jax.random.uniform(ks[1], (3 * H, H), jnp.float32, -scale, scale)
    b_ih = jax.random.uniform(ks[2], (3 * H,), jnp.float32, -scale, scale)
    b_hh = jax.random.uniform(ks[3], (3 * H,), jnp.float32, -scale, scale)
    w_p = jax.random.uniform(ks[4], (Dout, H), jnp.float32, -scale, scale)
    b_p = jax.random.uniform(ks[5], (Dout,), jnp.float32, -scale, scale)
    return {
        "w_ih_T": w_ih.T,                 # (Din, 3H)  gate order r|z|n
        "w_hh_T": w_hh.T,                 # (H, 3H)
        "b_ih": b_ih[None, :],            # (1, 3H)
        "b_hh": b_hh[None, :],            # (1, 3H)
        "w_p_T": w_p.T,                   # (H, Dout)
        "b_p": b_p[None, :],              # (1, Dout)
    }


if __name__ == "__main__":
    # Small shapes consistent with the module: GRU(text_hidden -> H), Linear(H -> Dout)
    N, T_enc = 2, 8
    text_hidden = 16
    prosody_predictor_dim = 32
    seq_prosody_hidden = 24

    key = jax.random.PRNGKey(0)
    k_x, k_p = jax.random.split(key)
    text_encoding = jax.random.normal(k_x, (N, T_enc, text_hidden), jnp.float32)
    text_lengths = [8, 5]                 # max length == T_enc here

    params = make_params(k_p, text_hidden, prosody_predictor_dim, seq_prosody_hidden)

    out = prosody_predictor_nonar(text_encoding, text_lengths, params)
    out = jax.block_until_ready(out)

    ref = _reference(text_encoding, text_lengths, params)
    np.testing.assert_allclose(np.asarray(out), np.asarray(ref), rtol=1e-5, atol=1e-5)

    # TODO(synk): add a bf16 weight/activation path (f32 gates/accum) for v6e/v7x.
    print("KERNEL_OK")
</pallas_src>

<mosaic_0001>
module attributes {stable_mosaic.version = 11 : i64} {
  func.func @_gru_block_kernel(%arg0: i32, %arg1: i32, %arg2: memref<1xi32, #tpu.memory_space<smem>>, %arg3: memref<8x8x32xf32, #tpu.memory_space<vmem>>, %arg4: memref<8x8x32xf32, #tpu.memory_space<vmem>>, %arg5: memref<8x8x32xf32, #tpu.memory_space<vmem>>, %arg6: memref<32x32xf32, #tpu.memory_space<vmem>>, %arg7: memref<32x32xf32, #tpu.memory_space<vmem>>, %arg8: memref<32x32xf32, #tpu.memory_space<vmem>>, %arg9: memref<1x32xf32, #tpu.memory_space<vmem>>, %arg10: memref<1x32xf32, #tpu.memory_space<vmem>>, %arg11: memref<1x32xf32, #tpu.memory_space<vmem>>, %arg12: memref<8x8x32xf32, #tpu.memory_space<vmem>>, %arg13: memref<8x32xf32, #tpu.memory_space<vmem>>) attributes {dimension_semantics = [#tpu.dimension_semantics<parallel>, #tpu.dimension_semantics<arbitrary>], iteration_bounds = array<i64: 1, 1>, scalar_prefetch = 1 : i64, scratch_operands = 1 : i64, tpu.core_type = #tpu.core_type<tc>, window_params = [{transform_indices = @transform_0, window_bounds = array<i64: 8, 8, 32>}, {transform_indices = @transform_1, window_bounds = array<i64: 8, 8, 32>}, {transform_indices = @transform_2, window_bounds = array<i64: 8, 8, 32>}, {pipeline_mode = #tpu.pipeline_mode<synchronous>, transform_indices = @transform_3, window_bounds = array<i64: 32, 32>}, {pipeline_mode = #tpu.pipeline_mode<synchronous>, transform_indices = @transform_4, window_bounds = array<i64: 32, 32>}, {pipeline_mode = #tpu.pipeline_mode<synchronous>, transform_indices = @transform_5, window_bounds = array<i64: 32, 32>}, {pipeline_mode = #tpu.pipeline_mode<synchronous>, transform_indices = @transform_6, window_bounds = array<i64: 1, 32>}, {pipeline_mode = #tpu.pipeline_mode<synchronous>, transform_indices = @transform_7, window_bounds = array<i64: 1, 32>}, {pipeline_mode = #tpu.pipeline_mode<synchronous>, transform_indices = @transform_8, window_bounds = array<i64: 1, 32>}, {transform_indices = @transform_9, window_bounds = array<i64: 8, 8, 32>}]} {
    %c0_i32 = arith.constant 0 : i32
    %0 = arith.cmpi eq, %arg1, %c0_i32 : i32
    %1 = arith.extui %0 : i1 to i32
    %c0_i32_0 = arith.constant 0 : i32
    %2 = arith.cmpi ne, %1, %c0_i32_0 : i32
    scf.if %2 {
      %cst = arith.constant 0.000000e+00 : f32
      %12 = vector.broadcast %cst : f32 to vector<8x32xf32>
      %c0 = arith.constant 0 : index
      %c0_3 = arith.constant 0 : index
      %13 = vector.load %arg13[%c0, %c0_3] : memref<8x32xf32, #tpu.memory_space<vmem>>, vector<8x32xf32>
      tpu.vector_store %arg13[%c0, %c0_3], %12 {strides = array<i32>} : memref<8x32xf32, #tpu.memory_space<vmem>>, vector<8x32xf32>,
    } else {
    }
    %c8_i32 = arith.constant 8 : i32
    %3 = arith.muli %arg1, %c8_i32 : i32
    %4 = arith.index_cast %arg0 : i32 to index
    %5 = memref.load %arg2[%4] : memref<1xi32, #tpu.memory_space<smem>>
    %6 = arith.cmpi sge, %3, %5 : i32
    %7 = arith.extui %6 : i1 to i32
    %c0_i32_1 = arith.constant 0 : i32
    %8 = arith.cmpi ne, %7, %c0_i32_1 : i32
    scf.if %8 {
      %cst = arith.constant 0.000000e+00 : f32
      %12 = vector.broadcast %cst : f32 to vector<8x8x32xf32>
      %c0 = arith.constant 0 : index
      %c0_3 = arith.constant 0 : index
      %c0_4 = arith.constant 0 : index
      %13 = vector.load %arg12[%c0, %c0_3, %c0_4] : memref<8x8x32xf32, #tpu.memory_space<vmem>>, vector<8x8x32xf32>
      tpu.vector_store %arg12[%c0, %c0_3, %c0_4], %12 {strides = array<i32>} : memref<8x8x32xf32, #tpu.memory_space<vmem>>, vector<8x8x32xf32>,
    } else {
    }
    %true = arith.constant true
    %9 = arith.xori %6, %true : i1
    %10 = arith.extui %9 : i1 to i32
    %c0_i32_2 = arith.constant 0 : i32
    %11 = arith.cmpi ne, %10, %c0_i32_2 : i32
    scf.if %11 {
      %c0 = arith.constant 0 : index
      %c0_3 = arith.constant 0 : index
      %12 = vector.load %arg6[%c0, %c0_3] : memref<32x32xf32, #tpu.memory_space<vmem>>, vector<32x32xf32>
      %c0_4 = arith.constant 0 : index
      %c0_5 = arith.constant 0 : index
      %13 = vector.load %arg7[%c0_4, %c0_5] : memref<32x32xf32, #tpu.memory_space<vmem>>, vector<32x32xf32>
      %c0_6 = arith.constant 0 : index
      %c0_7 = arith.constant 0 : index
      %14 = vector.load %arg8[%c0_6, %c0_7] : memref<32x32xf32, #tpu.memory_space<vmem>>, vector<32x32xf32>
      %c0_8 = arith.constant 0 : index
      %c0_9 = arith.constant 0 : index
      %15 = vector.load %arg9[%c0_8, %c0_9] : memref<1x32xf32, #tpu.memory_space<vmem>>, vector<1x32xf32>
      %c0_10 = arith.constant 0 : index
      %c0_11 = arith.constant 0 : index
      %16 = vector.load %arg10[%c0_10, %c0_11] : memref<1x32xf32, #tpu.memory_space<vmem>>, vector<1x32xf32>
      %c0_12 = arith.constant 0 : index
      %c0_13 = arith.constant 0 : index
      %17 = vector.load %arg11[%c0_12, %c0_13] : memref<1x32xf32, #tpu.memory_space<vmem>>, vector<1x32xf32>
      %c0_14 = arith.constant 0 : index
      %c0_15 = arith.constant 0 : index
      %18 = vector.load %arg13[%c0_14, %c0_15] : memref<8x32xf32, #tpu.memory_space<vmem>>, vector<8x32xf32>
      %c0_i32_16 = arith.constant 0 : i32
      %cst = arith.constant dense<0.000000e+00> : vector<8x32xf32>
      %19 = tpu.matmul %18, %12, %cst {dimension_numbers = #tpu.dot_dimension_numbers<[1], [0], [0], [1], [0, 0, 1, 1], [], []>} : vector<8x32xf32>, vector<32x32xf32>, vector<8x32xf32> -> vector<8x32xf32>
      %20 = vector.broadcast %15 : vector<1x32xf32> to vector<8x32xf32>
      %21 = arith.addf %19, %20 : vector<8x32xf32>
      %cst_17 = arith.constant dense<0.000000e+00> : vector<8x32xf32>
      %22 = tpu.matmul %18, %13, %cst_17 {dimension_numbers = #tpu.dot_dimension_numbers<[1], [0], [0], [1], [0, 0, 1, 1], [], []>} : vector<8x32xf32>, vector<32x32xf32>, vector<8x32xf32> -> vector<8x32xf32>
      %23 = vector.broadcast %16 : vector<1x32xf32> to vector<8x32xf32>
      %24 = arith.addf %22, %23 : vector<8x32xf32>
      %cst_18 = arith.constant dense<0.000000e+00> : vector<8x32xf32>
      %25 = tpu.matmul %18, %14, %cst_18 {dimension_numbers = #tpu.dot_dimension_numbers<[1], [0], [0], [1], [0, 0, 1, 1], [], []>} : vector<8x32xf32>, vector<32x32xf32>, vector<8x32xf32> -> vector<8x32xf32>
      %26 = vector.broadcast %17 : vector<1x32xf32> to vector<8x32xf32>
      %27 = arith.addf %25, %26 : vector<8x32xf32>
      %28 = arith.index_cast %c0_i32_16 : i32 to index
      %c0_19 = arith.constant 0 : index
      %c0_20 = arith.constant 0 : index
      %29 = vector.load %arg3[%28, %c0_19, %c0_20] : memref<8x8x32xf32, #tpu.memory_space<vmem>>, vector<1x8x32xf32>
      %30 = vector.shape_cast %29 : vector<1x8x32xf32> to vector<8x32xf32>
      %31 = arith.addf %30, %21 : vector<8x32xf32>
      %32 = arith.negf %31 : vector<8x32xf32>
      %33 = math.exp %32 : vector<8x32xf32>
      %cst_21 = arith.constant 1.000000e+00 : f32
      %34 = vector.broadcast %cst_21 : f32 to vector<8x32xf32>
      %35 = arith.addf %34, %33 : vector<8x32xf32>
      %36 = arith.divf %34, %35 : vector<8x32xf32>
      %37 = arith.index_cast %c0_i32_16 : i32 to index
      %c0_22 = arith.constant 0 : index
      %c0_23 = arith.constant 0 : index
      %38 = vector.load %arg4[%37, %c0_22, %c0_23] : memref<8x8x32xf32, #tpu.memory_space<vmem>>, vector<1x8x32xf32>
      %39 = vector.shape_cast %38 : vector<1x8x32xf32> to vector<8x32xf32>
      %40 = arith.addf %39, %24 : vector<8x32xf32>
      %41 = arith.negf %40 : vector<8x32xf32>
      %42 = math.exp %41 : vector<8x32xf32>
      %cst_24 = arith.constant 1.000000e+00 : f32
      %43 = vector.broadcast %cst_24 : f32 to vector<8x32xf32>
      %44 = arith.addf %43, %42 : vector<8x32xf32>
      %45 = arith.divf %43, %44 : vector<8x32xf32>
      %46 = arith.index_cast %c0_i32_16 : i32 to index
      %c0_25 = arith.constant 0 : index
      %c0_26 = arith.constant 0 : index
      %47 = vector.load %arg5[%46, %c0_25, %c0_26] : memref<8x8x32xf32, #tpu.memory_space<vmem>>, vector<1x8x32xf32>
      %48 = vector.shape_cast %47 : vector<1x8x32xf32> to vector<8x32xf32>
      %49 = arith.mulf %36, %27 : vector<8x32xf32>
      %50 = arith.addf %48, %49 : vector<8x32xf32>
      %51 = math.tanh %50 : vector<8x32xf32>
      %cst_27 = arith.constant 1.000000e+00 : f32
      %52 = vector.broadcast %cst_27 : f32 to vector<8x32xf32>
      %53 = arith.subf %52, %45 : vector<8x32xf32>
      %54 = arith.mulf %53, %51 : vector<8x32xf32>
      %55 = arith.mulf %45, %18 : vector<8x32xf32>
      %56 = arith.addf %54, %55 : vector<8x32xf32>
      %57 = arith.index_cast %c0_i32_16 : i32 to index
      %c0_28 = arith.constant 0 : index
      %c0_29 = arith.constant 0 : index
      %58 = vector.load %arg12[%57, %c0_28, %c0_29] : memref<8x8x32xf32, #tpu.memory_space<vmem>>, vector<1x8x32xf32>
      %59 = vector.shape_cast %58 : vector<1x8x32xf32> to vector<8x32xf32>
      %60 = vector.shape_cast %56 : vector<8x32xf32> to vector<1x8x32xf32>
      tpu.vector_store %arg12[%57, %c0_28, %c0_29], %60 {strides = array<i32>} : memref<8x8x32xf32, #tpu.memory_space<vmem>>, vector<1x8x32xf32>,
      %c1_i32 = arith.constant 1 : i32
      %cst_30 = arith.constant dense<0.000000e+00> : vector<8x32xf32>
      %61 = tpu.matmul %56, %12, %cst_30 {dimension_numbers = #tpu.dot_dimension_numbers<[1], [0], [0], [1], [0, 0, 1, 1], [], []>} : vector<8x32xf32>, vector<32x32xf32>, vector<8x32xf32> -> vector<8x32xf32>
      %62 = vector.broadcast %15 : vector<1x32xf32> to vector<8x32xf32>
      %63 = arith.addf %61, %62 : vector<8x32xf32>
      %cst_31 = arith.constant dense<0.000000e+00> : vector<8x32xf32>
      %64 = tpu.matmul %56, %13, %cst_31 {dimension_numbers = #tpu.dot_dimension_numbers<[1], [0], [0], [1], [0, 0, 1, 1], [], []>} : vector<8x32xf32>, vector<32x32xf32>, vector<8x32xf32> -> vector<8x32xf32>
      %65 = vector.broadcast %16 : vector<1x32xf32> to vector<8x32xf32>
      %66 = arith.addf %64, %65 : vector<8x32xf32>
      %cst_32 = arith.constant dense<0.000000e+00> : vector<8x32xf32>
      %67 = tpu.matmul %56, %14, %cst_32 {dimension_numbers = #tpu.dot_dimension_numbers<[1], [0], [0], [1], [0, 0, 1, 1], [], []>} : vector<8x32xf32>, vector<32x32xf32>, vector<8x32xf32> -> vector<8x32xf32>
      %68 = vector.broadcast %17 : vector<1x32xf32> to vector<8x32xf32>
      %69 = arith.addf %67, %68 : vector<8x32xf32>
      %70 = arith.index_cast %c1_i32 : i32 to index
      %c0_33 = arith.constant 0 : index
      %c0_34 = arith.constant 0 : index
      %71 = vector.load %arg3[%70, %c0_33, %c0_34] : memref<8x8x32xf32, #tpu.memory_space<vmem>>, vector<1x8x32xf32>
      %72 = vector.shape_cast %71 : vector<1x8x32xf32> to vector<8x32xf32>
      %73 = arith.addf %72, %63 : vector<8x32xf32>
      %74 = arith.negf %73 : vector<8x32xf32>
      %75 = math.exp %74 : vector<8x32xf32>
      %cst_35 = arith.constant 1.000000e+00 : f32
      %76 = vector.broadcast %cst_35 : f32 to vector<8x32xf32>
      %77 = arith.addf %76, %75 : vector<8x32xf32>
      %78 = arith.divf %76, %77 : vector<8x32xf32>
      %79 = arith.index_cast %c1_i32 : i32 to index
      %c0_36 = arith.constant 0 : index
      %c0_37 = arith.constant 0 : index
      %80 = vector.load %arg4[%79, %c0_36, %c0_37] : memref<8x8x32xf32, #tpu.memory_space<vmem>>, vector<1x8x32xf32>
      %81 = vector.shape_cast %80 : vector<1x8x32xf32> to vector<8x32xf32>
      %82 = arith.addf %81, %66 : vector<8x32xf32>
      %83 = arith.negf %82 : vector<8x32xf32>
      %84 = math.exp %83 : vector<8x32xf32>
      %cst_38 = arith.constant 1.000000e+00 : f32
      %85 = vector.broadcast %cst_38 : f32 to vector<8x32xf32>
      %86 = arith.addf %85, %84 : vector<8x32xf32>
      %87 = arith.divf %85, %86 : vector<8x32xf32>
      %88 = arith.index_cast %c1_i32 : i32 to index
      %c0_39 = arith.constant 0 : index
      %c0_40 = arith.constant 0 : index
      %89 = vector.load %arg5[%88, %c0_39, %c0_40] : memref<8x8x32xf32, #tpu.memory_space<vmem>>, vector<1x8x32xf32>
      %90 = vector.shape_cast %89 : vector<1x8x32xf32> to vector<8x32xf32>
      %91 = arith.mulf %78, %69 : vector<8x32xf32>
      %92 = arith.addf %90, %91 : vector<8x32xf32>
      %93 = math.tanh %92 : vector<8x32xf32>
      %cst_41 = arith.constant 1.000000e+00 : f32
      %94 = vector.broadcast %cst_41 : f32 to vector<8x32xf32>
      %95 = arith.subf %94, %87 : vector<8x32xf32>
      %96 = arith.mulf %95, %93 : vector<8x32xf32>
      %97 = arith.mulf %87, %56 : vector<8x32xf32>
      %98 = arith.addf %96, %97 : vector<8x32xf32>
      %99 = arith.index_cast %c1_i32 : i32 to index
      %c0_42 = arith.constant 0 : index
      %c0_43 = arith.constant 0 : index
      %100 = vector.load %arg12[%99, %c0_42, %c0_43] : memref<8x8x32xf32, #tpu.memory_space<vmem>>, vector<1x8x32xf32>
      %101 = vector.shape_cast %100 : vector<1x8x32xf32> to vector<8x32xf32>
      %102 = vector.shape_cast %98 : vector<8x32xf32> to vector<1x8x32xf32>
      tpu.vector_store %arg12[%99, %c0_42, %c0_43], %102 {strides = array<i32>} : memref<8x8x32xf32, #tpu.memory_space<vmem>>, vector<1x8x32xf32>,
      %c2_i32 = arith.constant 2 : i32
      %cst_44 = arith.constant dense<0.000000e+00> : vector<8x32xf32>
      %103 = tpu.matmul %98, %12, %cst_44 {dimension_numbers = #tpu.dot_dimension_numbers<[1], [0], [0], [1], [0, 0, 1, 1], [], []>} : vector<8x32xf32>, vector<32x32xf32>, vector<8x32xf32> -> vector<8x32xf32>
      %104 = vector.broadcast %15 : vector<1x32xf32> to vector<8x32xf32>
      %105 = arith.addf %103, %104 : vector<8x32xf32>
      %cst_45 = arith.constant dense<0.000000e+00> : vector<8x32xf32>
      %106 = tpu.matmul %98, %13, %cst_45 {dimension_numbers = #tpu.dot_dimension_numbers<[1], [0], [0], [1], [0, 0, 1, 1], [], []>} : vector<8x32xf32>, vector<32x32xf32>, vector<8x32xf32> -> vector<8x32xf32>
      %107 = vector.broadcast %16 : vector<1x32xf32> to vector<8x32xf32>
      %108 = arith.addf %106, %107 : vector<8x32xf32>
      %cst_46 = arith.constant dense<0.000000e+00> : vector<8x32xf32>
      %109 = tpu.matmul %98, %14, %cst_46 {dimension_numbers = #tpu.dot_dimension_numbers<[1], [0], [0], [1], [0, 0, 1, 1], [], []>} : vector<8x32xf32>, vector<32x32xf32>, vector<8x32xf32> -> vector<8x32xf32>
      %110 = vector.broadcast %17 : vector<1x32xf32> to vector<8x32xf32>
      %111 = arith.addf %109, %110 : vector<8x32xf32>
      %112 = arith.index_cast %c2_i32 : i32 to index
      %c0_47 = arith.constant 0 : index
      %c0_48 = arith.constant 0 : index
      %113 = vector.load %arg3[%112, %c0_47, %c0_48] : memref<8x8x32xf32, #tpu.memory_space<vmem>>, vector<1x8x32xf32>
      %114 = vector.shape_cast %113 : vector<1x8x32xf32> to vector<8x32xf32>
      %115 = arith.addf %114, %105 : vector<8x32xf32>
      %116 = arith.negf %115 : vector<8x32xf32>
      %117 = math.exp %116 : vector<8x32xf32>
      %cst_49 = arith.constant 1.000000e+00 : f32
      %118 = vector.broadcast %cst_49 : f32 to vector<8x32xf32>
      %119 = arith.addf %118, %117 : vector<8x32xf32>
      %120 = arith.divf %118, %119 : vector<8x32xf32>
      %121 = arith.index_cast %c2_i32 : i32 to index
      %c0_50 = arith.constant 0 : index
      %c0_51 = arith.constant 0 : index
      %122 = vector.load %arg4[%121, %c0_50, %c0_51] : memref<8x8x32xf32, #tpu.memory_space<vmem>>, vector<1x8x32xf32>
      %123 = vector.shape_cast %122 : vector<1x8x32xf32> to vector<8x32xf32>
      %124 = arith.addf %123, %108 : vector<8x32xf32>
      %125 = arith.negf %124 : vector<8x32xf32>
      %126 = math.exp %125 : vector<8x32xf32>
      %cst_52 = arith.constant 1.000000e+00 : f32
      %127 = vector.broadcast %cst_52 : f32 to vector<8x32xf32>
      %128 = arith.addf %127, %126 : vector<8x32xf32>
      %129 = arith.divf %127, %128 : vector<8x32xf32>
      %130 = arith.index_cast %c2_i32 : i32 to index
      %c0_53 = arith.constant 0 : index
      %c0_54 = arith.constant 0 : index
      %131 = vector.load %arg5[%130, %c0_53, %c0_54] : memref<8x8x32xf32, #tpu.memory_space<vmem>>, vector<1x8x32xf32>
      %132 = vector.shape_cast %131 : vector<1x8x32xf32> to vector<8x32xf32>
      %133 = arith.mulf %120, %111 : vector<8x32xf32>
      %134 = arith.addf %132, %133 : vector<8x32xf32>
      %135 = math.tanh %134 : vector<8x32xf32>
      %cst_55 = arith.constant 1.000000e+00 : f32
      %136 = vector.broadcast %cst_55 : f32 to vector<8x32xf32>
      %137 = arith.subf %136, %129 : vector<8x32xf32>
      %138 = arith.mulf %137, %135 : vector<8x32xf32>
      %139 = arith.mulf %129, %98 : vector<8x32xf32>
      %140 = arith.addf %138, %139 : vector<8x32xf32>
      %141 = arith.index_cast %c2_i32 : i32 to index
      %c0_56 = arith.constant 0 : index
      %c0_57 = arith.constant 0 : index
      %142 = vector.load %arg12[%141, %c0_56, %c0_57] : memref<8x8x32xf32, #tpu.memory_space<vmem>>, vector<1x8x32xf32>
      %143 = vector.shape_cast %142 : vector<1x8x32xf32> to vector<8x32xf32>
      %144 = vector.shape_cast %140 : vector<8x32xf32> to vector<1x8x32xf32>
      tpu.vector_store %arg12[%141, %c0_56, %c0_57], %144 {strides = array<i32>} : memref<8x8x32xf32, #tpu.memory_space<vmem>>, vector<1x8x32xf32>,
      %c3_i32 = arith.constant 3 : i32
      %cst_58 = arith.constant dense<0.000000e+00> : vector<8x32xf32>
      %145 = tpu.matmul %140, %12, %cst_58 {dimension_numbers = #tpu.dot_dimension_numbers<[1], [0], [0], [1], [0, 0, 1, 1], [], []>} : vector<8x32xf32>, vector<32x32xf32>, vector<8x32xf32> -> vector<8x32xf32>
      %146 = vector.broadcast %15 : vector<1x32xf32> to vector<8x32xf32>
      %147 = arith.addf %145, %146 : vector<8x32xf32>
      %cst_59 = arith.constant dense<0.000000e+00> : vector<8x32xf32>
      %148 = tpu.matmul %140, %13, %cst_59 {dimension_numbers = #tpu.dot_dimension_numbers<[1], [0], [0], [1], [0, 0, 1, 1], [], []>} : vector<8x32xf32>, vector<32x32xf32>, vector<8x32xf32> -> vector<8x32xf32>
      %149 = vector.broadcast %16 : vector<1x32xf32> to vector<8x32xf32>
      %150 = arith.addf %148, %149 : vector<8x32xf32>
      %cst_60 = arith.constant dense<0.000000e+00> : vector<8x32xf32>
      %151 = tpu.matmul %140, %14, %cst_60 {dimension_numbers = #tpu.dot_dimension_numbers<[1], [0], [0], [1], [0, 0, 1, 1], [], []>} : vector<8x32xf32>, vector<32x32xf32>, vector<8x32xf32> -> vector<8x32xf32>
      %152 = vector.broadcast %17 : vector<1x32xf32> to vector<8x32xf32>
      %153 = arith.addf %151, %152 : vector<8x32xf32>
      %154 = arith.index_cast %c3_i32 : i32 to index
      %c0_61 = arith.constant 0 : index
      %c0_62 = arith.constant 0 : index
      %155 = vector.load %arg3[%154, %c0_61, %c0_62] : memref<8x8x32xf32, #tpu.memory_space<vmem>>, vector<1x8x32xf32>
      %156 = vector.shape_cast %155 : vector<1x8x32xf32> to vector<8x32xf32>
      %157 = arith.addf %156, %147 : vector<8x32xf32>
      %158 = arith.negf %157 : vector<8x32xf32>
      %159 = math.exp %158 : vector<8x32xf32>
      %cst_63 = arith.constant 1.000000e+00 : f32
      %160 = vector.broadcast %cst_63 : f32 to vector<8x32xf32>
      %161 = arith.addf %160, %159 : vector<8x32xf32>
      %162 = arith.divf %160, %161 : vector<8x32xf32>
      %163 = arith.index_cast %c3_i32 : i32 to index
      %c0_64 = arith.constant 0 : index
      %c0_65 = arith.constant 0 : index
      %164 = vector.load %arg4[%163, %c0_64, %c0_65] : memref<8x8x32xf32, #tpu.memory_space<vmem>>, vector<1x8x32xf32>
      %165 = vector.shape_cast %164 : vector<1x8x32xf32> to vector<8x32xf32>
      %166 = arith.addf %165, %150 : vector<8x32xf32>
      %167 = arith.negf %166 : vector<8x32xf32>
      %168 = math.exp %167 : vector<8x32xf32>
      %cst_66 = arith.constant 1.000000e+00 : f32
      %169 = vector.broadcast %cst_66 : f32 to vector<8x32xf32>
      %170 = arith.addf %169, %168 : vector<8x32xf32>
      %171 = arith.divf %169, %170 : vector<8x32xf32>
      %172 = arith.index_cast %c3_i32 : i32 to index
      %c0_67 = arith.constant 0 : index
      %c0_68 = arith.constant 0 : index
      %173 = vector.load %arg5[%172, %c0_67, %c0_68] : memref<8x8x32xf32, #tpu.memory_space<vmem>>, vector<1x8x32xf32>
      %174 = vector.shape_cast %173 : vector<1x8x32xf32> to vector<8x32xf32>
      %175 = arith.mulf %162, %153 : vector<8x32xf32>
      %176 = arith.addf %174, %175 : vector<8x32xf32>
      %177 = math.tanh %176 : vector<8x32xf32>
      %cst_69 = arith.constant 1.000000e+00 : f32
      %178 = vector.broadcast %cst_69 : f32 to vector<8x32xf32>
      %179 = arith.subf %178, %171 : vector<8x32xf32>
      %180 = arith.mulf %179, %177 : vector<8x32xf32>
      %181 = arith.mulf %171, %140 : vector<8x32xf32>
      %182 = arith.addf %180, %181 : vector<8x32xf32>
      %183 = arith.index_cast %c3_i32 : i32 to index
      %c0_70 = arith.constant 0 : index
      %c0_71 = arith.constant 0 : index
      %184 = vector.load %arg12[%183, %c0_70, %c0_71] : memref<8x8x32xf32, #tpu.memory_space<vmem>>, vector<1x8x32xf32>
      %185 = vector.shape_cast %184 : vector<1x8x32xf32> to vector<8x32xf32>
      %186 = vector.shape_cast %182 : vector<8x32xf32> to vector<1x8x32xf32>
      tpu.vector_store %arg12[%183, %c0_70, %c0_71], %186 {strides = array<i32>} : memref<8x8x32xf32, #tpu.memory_space<vmem>>, vector<1x8x32xf32>,
      %c4_i32 = arith.constant 4 : i32
      %cst_72 = arith.constant dense<0.000000e+00> : vector<8x32xf32>
      %187 = tpu.matmul %182, %12, %cst_72 {dimension_numbers = #tpu.dot_dimension_numbers<[1], [0], [0], [1], [0, 0, 1, 1], [], []>} : vector<8x32xf32>, vector<32x32xf32>, vector<8x32xf32> -> vector<8x32xf32>
      %188 = vector.broadcast %15 : vector<1x32xf32> to vector<8x32xf32>
      %189 = arith.addf %187, %188 : vector<8x32xf32>
      %cst_73 = arith.constant dense<0.000000e+00> : vector<8x32xf32>
      %190 = tpu.matmul %182, %13, %cst_73 {dimension_numbers = #tpu.dot_dimension_numbers<[1], [0], [0], [1], [0, 0, 1, 1], [], []>} : vector<8x32xf32>, vector<32x32xf32>, vector<8x32xf32> -> vector<8x32xf32>
      %191 = vector.broadcast %16 : vector<1x32xf32> to vector<8x32xf32>
      %192 = arith.addf %190, %191 : vector<8x32xf32>
      %cst_74 = arith.constant dense<0.000000e+00> : vector<8x32xf32>
      %193 = tpu.matmul %182, %14, %cst_74 {dimension_numbers = #tpu.dot_dimension_numbers<[1], [0], [0], [1], [0, 0, 1, 1], [], []>} : vector<8x32xf32>, vector<32x32xf32>, vector<8x32xf32> -> vector<8x32xf32>
      %194 = vector.broadcast %17 : vector<1x32xf32> to vector<8x32xf32>
      %195 = arith.addf %193, %194 : vector<8x32xf32>
      %196 = arith.index_cast %c4_i32 : i32 to index
      %c0_75 = arith.constant 0 : index
      %c0_76 = arith.constant 0 : index
      %197 = vector.load %arg3[%196, %c0_75, %c0_76] : memref<8x8x32xf32, #tpu.memory_space<vmem>>, vector<1x8x32xf32>
      %198 = vector.shape_cast %197 : vector<1x8x32xf32> to vector<8x32xf32>
      %199 = arith.addf %198, %189 : vector<8x32xf32>
      %200 = arith.negf %199 : vector<8x32xf32>
      %201 = math.exp %200 : vector<8x32xf32>
      %cst_77 = arith.constant 1.000000e+00 : f32
      %202 = vector.broadcast %cst_77 : f32 to vector<8x32xf32>
      %203 = arith.addf %202, %201 : vector<8x32xf32>
      %204 = arith.divf %202, %203 : vector<8x32xf32>
      %205 = arith.index_cast %c4_i32 : i32 to index
      %c0_78 = arith.constant 0 : index
      %c0_79 = arith.constant 0 : index
      %206 = vector.load %arg4[%205, %c0_78, %c0_79] : memref<8x8x32xf32, #tpu.memory_space<vmem>>, vector<1x8x32xf32>
      %207 = vector.shape_cast %206 : vector<1x8x32xf32> to vector<8x32xf32>
      %208 = arith.addf %207, %192 : vector<8x32xf32>
      %209 = arith.negf %208 : vector<8x32xf32>
      %210 = math.exp %209 : vector<8x32xf32>
      %cst_80 = arith.constant 1.000000e+00 : f32
      %211 = vector.broadcast %cst_80 : f32 to vector<8x32xf32>
      %212 = arith.addf %211, %210 : vector<8x32xf32>
      %213 = arith.divf %211, %212 : vector<8x32xf32>
      %214 = arith.index_cast %c4_i32 : i32 to index
      %c0_81 = arith.constant 0 : index
      %c0_82 = arith.constant 0 : index
      %215 = vector.load %arg5[%214, %c0_81, %c0_82] : memref<8x8x32xf32, #tpu.memory_space<vmem>>, vector<1x8x32xf32>
      %216 = vector.shape_cast %215 : vector<1x8x32xf32> to vector<8x32xf32>
      %217 = arith.mulf %204, %195 : vector<8x32xf32>
      %218 = arith.addf %216, %217 : vector<8x32xf32>
      %219 = math.tanh %218 : vector<8x32xf32>
      %cst_83 = arith.constant 1.000000e+00 : f32
      %220 = vector.broadcast %cst_83 : f32 to vector<8x32xf32>
      %221 = arith.subf %220, %213 : vector<8x32xf32>
      %222 = arith.mulf %221, %219 : vector<8x32xf32>
      %223 = arith.mulf %213, %182 : vector<8x32xf32>
      %224 = arith.addf %222, %223 : vector<8x32xf32>
      %225 = arith.index_cast %c4_i32 : i32 to index
      %c0_84 = arith.constant 0 : index
      %c0_85 = arith.constant 0 : index
      %226 = vector.load %arg12[%225, %c0_84, %c0_85] : memref<8x8x32xf32, #tpu.memory_space<vmem>>, vector<1x8x32xf32>
      %227 = vector.shape_cast %226 : vector<1x8x32xf32> to vector<8x32xf32>
      %228 = vector.shape_cast %224 : vector<8x32xf32> to vector<1x8x32xf32>
      tpu.vector_store %arg12[%225, %c0_84, %c0_85], %228 {strides = array<i32>} : memref<8x8x32xf32, #tpu.memory_space<vmem>>, vector<1x8x32xf32>,
      %c5_i32 = arith.constant 5 : i32
      %cst_86 = arith.constant dense<0.000000e+00> : vector<8x32xf32>
      %229 = tpu.matmul %224, %12, %cst_86 {dimension_numbers = #tpu.dot_dimension_numbers<[1], [0], [0], [1], [0, 0, 1, 1], [], []>} : vector<8x32xf32>, vector<32x32xf32>, vector<8x32xf32> -> vector<8x32xf32>
      %230 = vector.broadcast %15 : vector<1x32xf32> to vector<8x32xf32>
      %231 = arith.addf %229, %230 : vector<8x32xf32>
      %cst_87 = arith.constant dense<0.000000e+00> : vector<8x32xf32>
      %232 = tpu.matmul %224, %13, %cst_87 {dimension_numbers = #tpu.dot_dimension_numbers<[1], [0], [0], [1], [0, 0, 1, 1], [], []>} : vector<8x32xf32>, vector<32x32xf32>, vector<8x32xf32> -> vector<8x32xf32>
      %233 = vector.broadcast %16 : vector<1x32xf32> to vector<8x32xf32>
      %234 = arith.addf %232, %233 : vector<8x32xf32>
      %cst_88 = arith.constant dense<0.000000e+00> : vector<8x32xf32>
      %235 = tpu.matmul %224, %14, %cst_88 {dimension_numbers = #tpu.dot_dimension_numbers<[1], [0], [0], [1], [0, 0, 1, 1], [], []>} : vector<8x32xf32>, vector<32x32xf32>, vector<8x32xf32> -> vector<8x32xf32>
      %236 = vector.broadcast %17 : vector<1x32xf32> to vector<8x32xf32>
      %237 = arith.addf %235, %236 : vector<8x32xf32>
      %238 = arith.index_cast %c5_i32 : i32 to index
      %c0_89 = arith.constant 0 : index
      %c0_90 = arith.constant 0 : index
      %239 = vector.load %arg3[%238, %c0_89, %c0_90] : memref<8x8x32xf32, #tpu.memory_space<vmem>>, vector<1x8x32xf32>
      %240 = vector.shape_cast %239 : vector<1x8x32xf32> to vector<8x32xf32>
      %241 = arith.addf %240, %231 : vector<8x32xf32>
      %242 = arith.negf %241 : vector<8x32xf32>
      %243 = math.exp %242 : vector<8x32xf32>
      %cst_91 = arith.constant 1.000000e+00 : f32
      %244 = vector.broadcast %cst_91 : f32 to vector<8x32xf32>
      %245 = arith.addf %244, %243 : vector<8x32xf32>
      %246 = arith.divf %244, %245 : vector<8x32xf32>
      %247 = arith.index_cast %c5_i32 : i32 to index
      %c0_92 = arith.constant 0 : index
      %c0_93 = arith.constant 0 : index
      %248 = vector.load %arg4[%247, %c0_92, %c0_93] : memref<8x8x32xf32, #tpu.memory_space<vmem>>, vector<1x8x32xf32>
      %249 = vector.shape_cast %248 : vector<1x8x32xf32> to vector<8x32xf32>
      %250 = arith.addf %249, %234 : vector<8x32xf32>
      %251 = arith.negf %250 : vector<8x32xf32>
      %252 = math.exp %251 : vector<8x32xf32>
      %cst_94 = arith.constant 1.000000e+00 : f32
      %253 = vector.broadcast %cst_94 : f32 to vector<8x32xf32>
      %254 = arith.addf %253, %252 : vector<8x32xf32>
      %255 = arith.divf %253, %254 : vector<8x32xf32>
      %256 = arith.index_cast %c5_i32 : i32 to index
      %c0_95 = arith.constant 0 : index
      %c0_96 = arith.constant 0 : index
      %257 = vector.load %arg5[%256, %c0_95, %c0_96] : memref<8x8x32xf32, #tpu.memory_space<vmem>>, vector<1x8x32xf32>
      %258 = vector.shape_cast %257 : vector<1x8x32xf32> to vector<8x32xf32>
      %259 = arith.mulf %246, %237 : vector<8x32xf32>
      %260 = arith.addf %258, %259 : vector<8x32xf32>
      %261 = math.tanh %260 : vector<8x32xf32>
      %cst_97 = arith.constant 1.000000e+00 : f32
      %262 = vector.broadcast %cst_97 : f32 to vector<8x32xf32>
      %263 = arith.subf %262, %255 : vector<8x32xf32>
      %264 = arith.mulf %263, %261 : vector<8x32xf32>
      %265 = arith.mulf %255, %224 : vector<8x32xf32>
      %266 = arith.addf %264, %265 : vector<8x32xf32>
      %267 = arith.index_cast %c5_i32 : i32 to index
      %c0_98 = arith.constant 0 : index
      %c0_99 = arith.constant 0 : index
      %268 = vector.load %arg12[%267, %c0_98, %c0_99] : memref<8x8x32xf32, #tpu.memory_space<vmem>>, vector<1x8x32xf32>
      %269 = vector.shape_cast %268 : vector<1x8x32xf32> to vector<8x32xf32>
      %270 = vector.shape_cast %266 : vector<8x32xf32> to vector<1x8x32xf32>
      tpu.vector_store %arg12[%267, %c0_98, %c0_99], %270 {strides = array<i32>} : memref<8x8x32xf32, #tpu.memory_space<vmem>>, vector<1x8x32xf32>,
      %c6_i32 = arith.constant 6 : i32
      %cst_100 = arith.constant dense<0.000000e+00> : vector<8x32xf32>
      %271 = tpu.matmul %266, %12, %cst_100 {dimension_numbers = #tpu.dot_dimension_numbers<[1], [0], [0], [1], [0, 0, 1, 1], [], []>} : vector<8x32xf32>, vector<32x32xf32>, vector<8x32xf32> -> vector<8x32xf32>
      %272 = vector.broadcast %15 : vector<1x32xf32> to vector<8x32xf32>
      %273 = arith.addf %271, %272 : vector<8x32xf32>
      %cst_101 = arith.constant dense<0.000000e+00> : vector<8x32xf32>
      %274 = tpu.matmul %266, %13, %cst_101 {dimension_numbers = #tpu.dot_dimension_numbers<[1], [0], [0], [1], [0, 0, 1, 1], [], []>} : vector<8x32xf32>, vector<32x32xf32>, vector<8x32xf32> -> vector<8x32xf32>
      %275 = vector.broadcast %16 : vector<1x32xf32> to vector<8x32xf32>
      %276 = arith.addf %274, %275 : vector<8x32xf32>
      %cst_102 = arith.constant dense<0.000000e+00> : vector<8x32xf32>
      %277 = tpu.matmul %266, %14, %cst_102 {dimension_numbers = #tpu.dot_dimension_numbers<[1], [0], [0], [1], [0, 0, 1, 1], [], []>} : vector<8x32xf32>, vector<32x32xf32>, vector<8x32xf32> -> vector<8x32xf32>
      %278 = vector.broadcast %17 : vector<1x32xf32> to vector<8x32xf32>
      %279 = arith.addf %277, %278 : vector<8x32xf32>
      %280 = arith.index_cast %c6_i32 : i32 to index
      %c0_103 = arith.constant 0 : index
      %c0_104 = arith.constant 0 : index
      %281 = vector.load %arg3[%280, %c0_103, %c0_104] : memref<8x8x32xf32, #tpu.memory_space<vmem>>, vector<1x8x32xf32>
      %282 = vector.shape_cast %281 : vector<1x8x32xf32> to vector<8x32xf32>
      %283 = arith.addf %282, %273 : vector<8x32xf32>
      %284 = arith.negf %283 : vector<8x32xf32>
      %285 = math.exp %284 : vector<8x32xf32>
      %cst_105 = arith.constant 1.000000e+00 : f32
      %286 = vector.broadcast %cst_105 : f32 to vector<8x32xf32>
      %287 = arith.addf %286, %285 : vector<8x32xf32>
      %288 = arith.divf %286, %287 : vector<8x32xf32>
      %289 = arith.index_cast %c6_i32 : i32 to index
      %c0_106 = arith.constant 0 : index
      %c0_107 = arith.constant 0 : index
      %290 = vector.load %arg4[%289, %c0_106, %c0_107] : memref<8x8x32xf32, #tpu.memory_space<vmem>>, vector<1x8x32xf32>
      %291 = vector.shape_cast %290 : vector<1x8x32xf32> to vector<8x32xf32>
      %292 = arith.addf %291, %276 : vector<8x32xf32>
      %293 = arith.negf %292 : vector<8x32xf32>
      %294 = math.exp %293 : vector<8x32xf32>
      %cst_108 = arith.constant 1.000000e+00 : f32
      %295 = vector.broadcast %cst_108 : f32 to vector<8x32xf32>
      %296 = arith.addf %295, %294 : vector<8x32xf32>
      %297 = arith.divf %295, %296 : vector<8x32xf32>
      %298 = arith.index_cast %c6_i32 : i32 to index
      %c0_109 = arith.constant 0 : index
      %c0_110 = arith.constant 0 : index
      %299 = vector.load %arg5[%298, %c0_109, %c0_110] : memref<8x8x32xf32, #tpu.memory_space<vmem>>, vector<1x8x32xf32>
      %300 = vector.shape_cast %299 : vector<1x8x32xf32> to vector<8x32xf32>
      %301 = arith.mulf %288, %279 : vector<8x32xf32>
      %302 = arith.addf %300, %301 : vector<8x32xf32>
      %303 = math.tanh %302 : vector<8x32xf32>
      %cst_111 = arith.constant 1.000000e+00 : f32
      %304 = vector.broadcast %cst_111 : f32 to vector<8x32xf32>
      %305 = arith.subf %304, %297 : vector<8x32xf32>
      %306 = arith.mulf %305, %303 : vector<8x32xf32>
      %307 = arith.mulf %297, %266 : vector<8x32xf32>
      %308 = arith.addf %306, %307 : vector<8x32xf32>
      %309 = arith.index_cast %c6_i32 : i32 to index
      %c0_112 = arith.constant 0 : index
      %c0_113 = arith.constant 0 : index
      %310 = vector.load %arg12[%309, %c0_112, %c0_113] : memref<8x8x32xf32, #tpu.memory_space<vmem>>, vector<1x8x32xf32>
      %311 = vector.shape_cast %310 : vector<1x8x32xf32> to vector<8x32xf32>
      %312 = vector.shape_cast %308 : vector<8x32xf32> to vector<1x8x32xf32>
      tpu.vector_store %arg12[%309, %c0_112, %c0_113], %312 {strides = array<i32>} : memref<8x8x32xf32, #tpu.memory_space<vmem>>, vector<1x8x32xf32>,
      %c7_i32 = arith.constant 7 : i32
      %cst_114 = arith.constant dense<0.000000e+00> : vector<8x32xf32>
      %313 = tpu.matmul %308, %12, %cst_114 {dimension_numbers = #tpu.dot_dimension_numbers<[1], [0], [0], [1], [0, 0, 1, 1], [], []>} : vector<8x32xf32>, vector<32x32xf32>, vector<8x32xf32> -> vector<8x32xf32>
      %314 = vector.broadcast %15 : vector<1x32xf32> to vector<8x32xf32>
      %315 = arith.addf %313, %314 : vector<8x32xf32>
      %cst_115 = arith.constant dense<0.000000e+00> : vector<8x32xf32>
      %316 = tpu.matmul %308, %13, %cst_115 {dimension_numbers = #tpu.dot_dimension_numbers<[1], [0], [0], [1], [0, 0, 1, 1], [], []>} : vector<8x32xf32>, vector<32x32xf32>, vector<8x32xf32> -> vector<8x32xf32>
      %317 = vector.broadcast %16 : vector<1x32xf32> to vector<8x32xf32>
      %318 = arith.addf %316, %317 : vector<8x32xf32>
      %cst_116 = arith.constant dense<0.000000e+00> : vector<8x32xf32>
      %319 = tpu.matmul %308, %14, %cst_116 {dimension_numbers = #tpu.dot_dimension_numbers<[1], [0], [0], [1], [0, 0, 1, 1], [], []>} : vector<8x32xf32>, vector<32x32xf32>, vector<8x32xf32> -> vector<8x32xf32>
      %320 = vector.broadcast %17 : vector<1x32xf32> to vector<8x32xf32>
      %321 = arith.addf %319, %320 : vector<8x32xf32>
      %322 = arith.index_cast %c7_i32 : i32 to index
      %c0_117 = arith.constant 0 : index
      %c0_118 = arith.constant 0 : index
      %323 = vector.load %arg3[%322, %c0_117, %c0_118] : memref<8x8x32xf32, #tpu.memory_space<vmem>>, vector<1x8x32xf32>
      %324 = vector.shape_cast %323 : vector<1x8x32xf32> to vector<8x32xf32>
      %325 = arith.addf %324, %315 : vector<8x32xf32>
      %326 = arith.negf %325 : vector<8x32xf32>
      %327 = math.exp %326 : vector<8x32xf32>
      %cst_119 = arith.constant 1.000000e+00 : f32
      %328 = vector.broadcast %cst_119 : f32 to vector<8x32xf32>
      %329 = arith.addf %328, %327 : vector<8x32xf32>
      %330 = arith.divf %328, %329 : vector<8x32xf32>
      %331 = arith.index_cast %c7_i32 : i32 to index
      %c0_120 = arith.constant 0 : index
      %c0_121 = arith.constant 0 : index
      %332 = vector.load %arg4[%331, %c0_120, %c0_121] : memref<8x8x32xf32, #tpu.memory_space<vmem>>, vector<1x8x32xf32>
      %333 = vector.shape_cast %332 : vector<1x8x32xf32> to vector<8x32xf32>
      %334 = arith.addf %333, %318 : vector<8x32xf32>
      %335 = arith.negf %334 : vector<8x32xf32>
      %336 = math.exp %335 : vector<8x32xf32>
      %cst_122 = arith.constant 1.000000e+00 : f32
      %337 = vector.broadcast %cst_122 : f32 to vector<8x32xf32>
      %338 = arith.addf %337, %336 : vector<8x32xf32>
      %339 = arith.divf %337, %338 : vector<8x32xf32>
      %340 = arith.index_cast %c7_i32 : i32 to index
      %c0_123 = arith.constant 0 : index
      %c0_124 = arith.constant 0 : index
      %341 = vector.load %arg5[%340, %c0_123, %c0_124] : memref<8x8x32xf32, #tpu.memory_space<vmem>>, vector<1x8x32xf32>
      %342 = vector.shape_cast %341 : vector<1x8x32xf32> to vector<8x32xf32>
      %343 = arith.mulf %330, %321 : vector<8x32xf32>
      %344 = arith.addf %342, %343 : vector<8x32xf32>
      %345 = math.tanh %344 : vector<8x32xf32>
      %cst_125 = arith.constant 1.000000e+00 : f32
      %346 = vector.broadcast %cst_125 : f32 to vector<8x32xf32>
      %347 = arith.subf %346, %339 : vector<8x32xf32>
      %348 = arith.mulf %347, %345 : vector<8x32xf32>
      %349 = arith.mulf %339, %308 : vector<8x32xf32>
      %350 = arith.addf %348, %349 : vector<8x32xf32>
      %351 = arith.index_cast %c7_i32 : i32 to index
      %c0_126 = arith.constant 0 : index
      %c0_127 = arith.constant 0 : index
      %352 = vector.load %arg12[%351, %c0_126, %c0_127] : memref<8x8x32xf32, #tpu.memory_space<vmem>>, vector<1x8x32xf32>
      %353 = vector.shape_cast %352 : vector<1x8x32xf32> to vector<8x32xf32>
      %354 = vector.shape_cast %350 : vector<8x32xf32> to vector<1x8x32xf32>
      tpu.vector_store %arg12[%351, %c0_126, %c0_127], %354 {strides = array<i32>} : memref<8x8x32xf32, #tpu.memory_space<vmem>>, vector<1x8x32xf32>,
      %c8_i32_128 = arith.constant 8 : i32
      %c0_129 = arith.constant 0 : index
      %c0_130 = arith.constant 0 : index
      %355 = vector.load %arg13[%c0_129, %c0_130] : memref<8x32xf32, #tpu.memory_space<vmem>>, vector<8x32xf32>
      tpu.vector_store %arg13[%c0_129, %c0_130], %350 {strides = array<i32>} : memref<8x32xf32, #tpu.memory_space<vmem>>, vector<8x32xf32>,
    } else {
    }
    return
  }
  func.func @transform_0(%arg0: i32, %arg1: i32, %arg2: memref<1xi32, #tpu.memory_space<smem>>) -> (i32, i32, i32) {
    %c0_i32 = arith.constant 0 : i32
    %c0_i32_0 = arith.constant 0 : i32
    return %arg1, %arg0, %c0_i32 : i32, i32, i32
  }
  func.func @transform_1(%arg0: i32, %arg1: i32, %arg2: memref<1xi32, #tpu.memory_space<smem>>) -> (i32, i32, i32) {
    %c0_i32 = arith.constant 0 : i32
    %c0_i32_0 = arith.constant 0 : i32
    return %arg1, %arg0, %c0_i32 : i32, i32, i32
  }
  func.func @transform_2(%arg0: i32, %arg1: i32, %arg2: memref<1xi32, #tpu.memory_space<smem>>) -> (i32, i32, i32) {
    %c0_i32 = arith.constant 0 : i32
    %c0_i32_0 = arith.constant 0 : i32
    return %arg1, %arg0, %c0_i32 : i32, i32, i32
  }
  func.func @transform_3(%arg0: i32, %arg1: i32, %arg2: memref<1xi32, #tpu.memory_space<smem>>) -> (i32, i32) {
    %c0_i32 = arith.constant 0 : i32
    %c0_i32_0 = arith.constant 0 : i32
    %c0_i32_1 = arith.constant 0 : i32
    return %c0_i32, %c0_i32_0 : i32, i32
  }
  func.func @transform_4(%arg0: i32, %arg1: i32, %arg2: memref<1xi32, #tpu.memory_space<smem>>) -> (i32, i32) {
    %c0_i32 = arith.constant 0 : i32
    %c0_i32_0 = arith.constant 0 : i32
    %c0_i32_1 = arith.constant 0 : i32
    return %c0_i32, %c0_i32_0 : i32, i32
  }
  func.func @transform_5(%arg0: i32, %arg1: i32, %arg2: memref<1xi32, #tpu.memory_space<smem>>) -> (i32, i32) {
    %c0_i32 = arith.constant 0 : i32
    %c0_i32_0 = arith.constant 0 : i32
    %c0_i32_1 = arith.constant 0 : i32
    return %c0_i32, %c0_i32_0 : i32, i32
  }
  func.func @transform_6(%arg0: i32, %arg1: i32, %arg2: memref<1xi32, #tpu.memory_space<smem>>) -> (i32, i32) {
    %c0_i32 = arith.constant 0 : i32
    %c0_i32_0 = arith.constant 0 : i32
    %c0_i32_1 = arith.constant 0 : i32
    return %c0_i32, %c0_i32_0 : i32, i32
  }
  func.func @transform_7(%arg0: i32, %arg1: i32, %arg2: memref<1xi32, #tpu.memory_space<smem>>) -> (i32, i32) {
    %c0_i32 = arith.constant 0 : i32
    %c0_i32_0 = arith.constant 0 : i32
    %c0_i32_1 = arith.constant 0 : i32
    return %c0_i32, %c0_i32_0 : i32, i32
  }
  func.func @transform_8(%arg0: i32, %arg1: i32, %arg2: memref<1xi32, #tpu.memory_space<smem>>) -> (i32, i32) {
    %c0_i32 = arith.constant 0 : i32
    %c0_i32_0 = arith.constant 0 : i32
    %c0_i32_1 = arith.constant 0 : i32
    return %c0_i32, %c0_i32_0 : i32, i32
  }
  func.func @transform_9(%arg0: i32, %arg1: i32, %arg2: memref<1xi32, #tpu.memory_space<smem>>) -> (i32, i32, i32) {
    %c0_i32 = arith.constant 0 : i32
    %c0_i32_0 = arith.constant 0 : i32
    return %arg1, %arg0, %c0_i32 : i32, i32, i32
  }
}

</mosaic_0001>

<llo_original>
// kernel: tpu_custom_call.1
$region0: #{tpu_custom_call.1}
  #allocation0 [shape = 'u32[]', space=smem, size = 0x4, offset = 0x4, fixed_abs, tag = 'smem constant byte address 0x4 - core index']
  #allocation1 [shape = 'u32[144,128]{1,0:T(1,128)}', space=vmem, size = 0x12000, scoped, tag = 'internal scratch']
  #allocation2 [shape = 'f32[8,32]{1,0:T(8,128)}', space=vmem, size = 0x1000, scoped, tag = 'scratch operand']
  #allocation3 [shape = 's32[1]{0}', space=sflag, size = 0x4, scoped, tag = 'scoped memory for tpu_custom_call.1']
  #allocation4 [shape = 's32[1]{0:T(128)S(6)}', space=smem, size = 0x200, scoped, tag = 'prefetched SMEM operand 0']
  %s0 = inlined_call_operand.<no memory space> [shape: s32[1], index: 0, kind: input, shape index: {}]
  %s1 = inlined_call_operand.hbm [shape: f32[8,8,32], index: 1, kind: input, shape index: {}]
  %s2 = inlined_call_operand.hbm [shape: f32[8,8,32], index: 2, kind: input, shape index: {}]
  %s3 = inlined_call_operand.hbm [shape: f32[8,8,32], index: 3, kind: input, shape index: {}]
  %s4 = inlined_call_operand.hbm [shape: f32[32,32], index: 4, kind: input, shape index: {}]
  %s5 = inlined_call_operand.hbm [shape: f32[32,32], index: 5, kind: input, shape index: {}]
  %s6 = inlined_call_operand.hbm [shape: f32[32,32], index: 6, kind: input, shape index: {}]
  %s7 = inlined_call_operand.vmem [shape: f32[1,32], index: 7, kind: input, shape index: {}]
  %s8 = inlined_call_operand.vmem [shape: f32[1,32], index: 8, kind: input, shape index: {}]
  %s9 = inlined_call_operand.vmem [shape: f32[1,32], index: 9, kind: input, shape index: {}]
  %s10 = inlined_call_operand.hbm [shape: f32[8,8,32], index: 10, kind: output, shape index: {}]
  %s11 = sld [smem:[#allocation0]]
  $region82: #{tpu_custom_call.1} parent=0
    _
  %s13 = ssub.s32 1, %s11
  %s14 = scalar_select 0, %s13, %s11
  %15 = sst [smem:[#allocation4]] %s0
  $region1: #{tpu_custom_call.1} parent=0
    #allocation5 [shape = 'u8[32768]{0}', space=vmem, size = 0x8000, scoped, tag = 'input window, operand 1, single buffered']
    #allocation6 [shape = 's32[1]{0}', space=sflag, size = 0x4, scoped, tag = 'scoped memory for tpu_custom_call.1']
    #allocation7 [shape = 's32[1]{0}', space=sflag, size = 0x4, scoped, tag = 'scoped memory for tpu_custom_call.1']
    #allocation8 [shape = 'u8[32768]{0}', space=vmem, size = 0x8000, scoped, tag = 'input window, operand 2, single buffered']
    #allocation9 [shape = 's32[1]{0}', space=sflag, size = 0x4, scoped, tag = 'scoped memory for tpu_custom_call.1']
    #allocation10 [shape = 'u8[32768]{0}', space=vmem, size = 0x8000, scoped, tag = 'input window, operand 3, single buffered']
    #allocation11 [shape = 'u8[16384]{0}', space=vmem, size = 0x4000, scoped, tag = 'input window, operand 4, single buffered']
    #allocation12 [shape = 's32[1]{0}', space=sflag, size = 0x4, scoped, tag = 'scoped memory for tpu_custom_call.1']
    #allocation13 [shape = 'u8[16384]{0}', space=vmem, size = 0x4000, scoped, tag = 'input window, operand 5, single buffered']
    #allocation14 [shape = 'u8[16384]{0}', space=vmem, size = 0x4000, scoped, tag = 'input window, operand 6, single buffered']
    #allocation15 [shape = 's32[1]{0}', space=sflag, size = 0x4, scoped, tag = 'scoped memory for tpu_custom_call.1']
    #allocation16 [shape = 'u8[32768]{0}', space=vmem, size = 0x8000, scoped, tag = 'output window, operand 0, single buffered']
    %16 = vsyncpa [#allocation6], 0
    %17 = vsyncpa [#allocation9], 0
    %18 = vsyncpa [#allocation12], 0
    %19 = vsyncpa [#allocation15], 0
    %20 = vsyncpa [#allocation7], 0
    // Predicated region
    $region2: #{tpu_custom_call.1} parent=1 // pred_check
      _
    $region3: #{tpu_custom_call.1} parent=1 // pred_check_branch
      %22 = sbr.rel (0) target = $region5
    $region4: #{tpu_custom_call.1} parent=1 // pred_region
      %s24 = ssub.s32 1024, 1024
      %25 = vsyncadd [#allocation6], %s24
      %s26 = sshll.u32 [#allocation5], 4
      %s27 = int_to_ptr.vmem [resolvable:$true] %s26
      %32 = dma.hbm_to_vmem [thread:$0]  %s1, 1024, %s27, [#allocation6], 128, 128, 8
    $region5: #{tpu_custom_call.1} parent=1 // pred_fallthru
      _
    // Predicated region
    $region6: #{tpu_custom_call.1} parent=1 // pred_check
      _
    $region7: #{tpu_custom_call.1} parent=1 // pred_check_branch
      %34 = sbr.rel (0) target = $region9
    $region8: #{tpu_custom_call.1} parent=1 // pred_region
      %s36 = ssub.s32 1024, 1024
      %37 = vsyncadd [#allocation9], %s36
      %s38 = sshll.u32 [#allocation8], 4
      %s39 = int_to_ptr.vmem [resolvable:$true] %s38
      %44 = dma.hbm_to_vmem [thread:$0]  %s2, 1024, %s39, [#allocation9], 128, 128, 8
    $region9: #{tpu_custom_call.1} parent=1 // pred_fallthru
      _
    // Predicated region
    $region10: #{tpu_custom_call.1} parent=1 // pred_check
      _
    $region11: #{tpu_custom_call.1} parent=1 // pred_check_branch
      %46 = sbr.rel (0) target = $region13
    $region12: #{tpu_custom_call.1} parent=1 // pred_region
      %s48 = ssub.s32 1024, 1024
      %49 = vsyncadd [#allocation9], %s48
      %s50 = sshll.u32 [#allocation10], 4
      %s51 = int_to_ptr.vmem [resolvable:$true] %s50
      %56 = dma.hbm_to_vmem [thread:$0]  %s3, 1024, %s51, [#allocation9], 128, 128, 8
    $region13: #{tpu_custom_call.1} parent=1 // pred_fallthru
      _
    // Predicated region
    $region14: #{tpu_custom_call.1} parent=1 // pred_check
      _
    $region15: #{tpu_custom_call.1} parent=1 // pred_check_branch
      %58 = sbr.rel (0) target = $region17
    $region16: #{tpu_custom_call.1} parent=1 // pred_region
      %s60 = ssub.s32 512, 512
      %61 = vsyncadd [#allocation12], %s60
      %s62 = sshll.u32 [#allocation11], 4
      %s63 = int_to_ptr.vmem [resolvable:$true] %s62
      %68 = dma.hbm_to_vmem [thread:$0]  %s4, 512, %s63, [#allocation12], 128, 128, 8
    $region17: #{tpu_custom_call.1} parent=1 // pred_fallthru
      _
    // Predicated region
    $region18: #{tpu_custom_call.1} parent=1 // pred_check
      _
    $region19: #{tpu_custom_call.1} parent=1 // pred_check_branch
      %70 = sbr.rel (0) target = $region21
    $region20: #{tpu_custom_call.1} parent=1 // pred_region
      %s72 = ssub.s32 512, 512
      %73 = vsyncadd [#allocation12], %s72
      %s74 = sshll.u32 [#allocation13], 4
      %s75 = int_to_ptr.vmem [resolvable:$true] %s74
      %80 = dma.hbm_to_vmem [thread:$0]  %s5, 512, %s75, [#allocation12], 128, 128, 8
    $region21: #{tpu_custom_call.1} parent=1 // pred_fallthru
      _
    // Predicated region
    $region22: #{tpu_custom_call.1} parent=1 // pred_check
      _
    $region23: #{tpu_custom_call.1} parent=1 // pred_check_branch
      %82 = sbr.rel (0) target = $region25
    $region24: #{tpu_custom_call.1} parent=1 // pred_region
      %s84 = ssub.s32 512, 512
      %85 = vsyncadd [#allocation15], %s84
      %s86 = sshll.u32 [#allocation14], 4
      %s87 = int_to_ptr.vmem [resolvable:$true] %s86
      %92 = dma.hbm_to_vmem [thread:$0]  %s6, 512, %s87, [#allocation15], 128, 128, 8
    $region25: #{tpu_custom_call.1} parent=1 // pred_fallthru
      _
    // Predicated region
    $region26: #{tpu_custom_call.1} parent=1 // pred_check
      _
    $region27: #{tpu_custom_call.1} parent=1 // pred_check_branch
      %94 = sbr.rel (0) target = $region29
    $region28: #{tpu_custom_call.1} parent=1 // pred_region
      _
    $region29: #{tpu_custom_call.1} parent=1 // pred_fallthru
      _
    // Predicated region
    $region30: #{tpu_custom_call.1} parent=1 // pred_check
      _
    $region31: #{tpu_custom_call.1} parent=1 // pred_check_branch
      %96 = sbr.rel (0) target = $region33
    $region32: #{tpu_custom_call.1} parent=1 // pred_region
      _
    $region33: #{tpu_custom_call.1} parent=1 // pred_fallthru
      _
    // Predicated region
    $region34: #{tpu_custom_call.1} parent=1 // pred_check
      _
    $region35: #{tpu_custom_call.1} parent=1 // pred_check_branch
      %98 = sbr.rel (0) target = $region37
    $region36: #{tpu_custom_call.1} parent=1 // pred_region
      _
    $region37: #{tpu_custom_call.1} parent=1 // pred_fallthru
      _
    // Predicated region
    $region38: #{tpu_custom_call.1} parent=1 // pred_check
      _
    $region39: #{tpu_custom_call.1} parent=1 // pred_check_branch
      %100 = sbr.rel (0) target = $region41
    $region40: #{tpu_custom_call.1} parent=1 // pred_region
      %101 = dma.done [#allocation6], 1024
    $region41: #{tpu_custom_call.1} parent=1 // pred_fallthru
      _
    // Predicated region
    $region42: #{tpu_custom_call.1} parent=1 // pred_check
      _
    $region43: #{tpu_custom_call.1} parent=1 // pred_check_branch
      %103 = sbr.rel (0) target = $region45
    $region44: #{tpu_custom_call.1} parent=1 // pred_region
      %104 = dma.done [#allocation9], 1024
    $region45: #{tpu_custom_call.1} parent=1 // pred_fallthru
      _
    // Predicated region
    $region46: #{tpu_custom_call.1} parent=1 // pred_check
      _
    $region47: #{tpu_custom_call.1} parent=1 // pred_check_branch
      %106 = sbr.rel (0) target = $region49
    $region48: #{tpu_custom_call.1} parent=1 // pred_region
      %107 = dma.done [#allocation9], 1024
    $region49: #{tpu_custom_call.1} parent=1 // pred_fallthru
      _
    // Predicated region
    $region50: #{tpu_custom_call.1} parent=1 // pred_check
      _
    $region51: #{tpu_custom_call.1} parent=1 // pred_check_branch
      %109 = sbr.rel (0) target = $region53
    $region52: #{tpu_custom_call.1} parent=1 // pred_region
      %110 = dma.done [#allocation12], 512
    $region53: #{tpu_custom_call.1} parent=1 // pred_fallthru
      _
    // Predicated region
    $region54: #{tpu_custom_call.1} parent=1 // pred_check
      _
    $region55: #{tpu_custom_call.1} parent=1 // pred_check_branch
      %112 = sbr.rel (0) target = $region57
    $region56: #{tpu_custom_call.1} parent=1 // pred_region
      %113 = dma.done [#allocation12], 512
    $region57: #{tpu_custom_call.1} parent=1 // pred_fallthru
      _
    // Predicated region
    $region58: #{tpu_custom_call.1} parent=1 // pred_check
      _
    $region59: #{tpu_custom_call.1} parent=1 // pred_check_branch
      %115 = sbr.rel (0) target = $region61
    $region60: #{tpu_custom_call.1} parent=1 // pred_region
      %116 = dma.done [#allocation15], 512
    $region61: #{tpu_custom_call.1} parent=1 // pred_fallthru
      _
    %p117 = scmp.eq.s32.totalorder 0, 0
    // Predicated region
    $region62: #{tpu_custom_call.1} parent=1 // pred_check
      %p118 = pneg %p117
    $region63: #{tpu_custom_call.1} parent=1 // pred_check_branch
      %120 = sbr.rel (%p118) target = $region65
    $region64: #{tpu_custom_call.1} parent=1 // pred_region
      %vm121 = vcmask 261120
      %122 = vst.msk [vmem:[#allocation2] sm:$0xff] %vm121, 0.0
    $region65: #{tpu_custom_call.1} parent=1 // pred_fallthru
      _
    %s123 = smul.u32 0, 8
    %s124 = sld [smem:[#allocation4]]
    %p125 = scmp.ge.s32.totalorder %s123, %s124
    // Predicated region
    $region66: #{tpu_custom_call.1} parent=1 // pred_check
      %p126 = pneg %p125
    $region67: #{tpu_custom_call.1} parent=1 // pred_check_branch
      %128 = sbr.rel (%p126) target = $region69
    $region68: #{tpu_custom_call.1} parent=1 // pred_region
      %vm129 = vcmask 261120
      %130 = vst.msk [vmem:[#allocation16] sm:$0xff] %vm129, 0.0
      %131 = vst.msk [vmem:[#allocation16 + $0x8] sm:$0xff] %vm129, 0.0
      %132 = vst.msk [vmem:[#allocation16 + $0x10] sm:$0xff] %vm129, 0.0
      %133 = vst.msk [vmem:[#allocation16 + $0x18] sm:$0xff] %vm129, 0.0
      %134 = vst.msk [vmem:[#allocation16 + $0x20] sm:$0xff] %vm129, 0.0
      %135 = vst.msk [vmem:[#allocation16 + $0x28] sm:$0xff] %vm129, 0.0
      %136 = vst.msk [vmem:[#allocation16 + $0x30] sm:$0xff] %vm129, 0.0
      %137 = vst.msk [vmem:[#allocation16 + $0x38] sm:$0xff] %vm129, 0.0
    $region69: #{tpu_custom_call.1} parent=1 // pred_fallthru
      _
    %p138 = scmp.lt.s32.totalorder %s123, %s124
    // Predicated region
    $region70: #{tpu_custom_call.1} parent=1 // pred_check
      %p139 = pneg %p138
    $region71: #{tpu_custom_call.1} parent=1 // pred_check_branch
      %141 = sbr.rel (%p139) target = $region73
    $region72: #{tpu_custom_call.1} parent=1 // pred_region
      %v142 = vld [vmem:[#allocation11] sm:$0xff]
      %v143 = vld [vmem:[#allocation11 + $0x8] sm:$0xff]
      %v144 = vld [vmem:[#allocation11 + $0x10] sm:$0xff]
      %v145 = vld [vmem:[#allocation11 + $0x18] sm:$0xff]
      %v146 = vld [vmem:[#allocation13] sm:$0xff]
      %v147 = vld [vmem:[#allocation13 + $0x8] sm:$0xff]
      %v148 = vld [vmem:[#allocation13 + $0x10] sm:$0xff]
      %v149 = vld [vmem:[#allocation13 + $0x18] sm:$0xff]
      %v150 = vld [vmem:[#allocation14] sm:$0xff]
      %v151 = vld [vmem:[#allocation14 + $0x8] sm:$0xff]
      %v152 = vld [vmem:[#allocation14 + $0x10] sm:$0xff]
      %v153 = vld [vmem:[#allocation14 + $0x18] sm:$0xff]
      %v154 = vld [vmem:[%s7] sm:$0x1]
      %v155 = vld [vmem:[%s8] sm:$0x1]
      %v156 = vld [vmem:[%s9] sm:$0x1]
      %v157 = vld [vmem:[#allocation2] sm:$0xff]
      %v159 = vlaneseq
      %v160 = vshrl.u32 %v159, 7
      %v161 = vsub.s32 0, %v160
      %v162 = vrot.slane %v154, %v161
      %vm164 = vcmask 261120
      %v166 = vsel %vm164, %v157, 0
      %168 = vmatprep.subr.mxu0 0.0
      %169 = vmatpush1.msra.mxu0 %v142
      %170 = vmatprep.subr.mxu0 0.0
      %171 = vmatpush1.msra.mxu0 %v143
      %172 = vmatprep.subr.mxu0 0.0
      %173 = vmatpush1.msra.mxu0 %v144
      %174 = vmatprep.subr.mxu0 0.0
      %175 = vmatpush1.msra.mxu0 %v145
      %176 = vmatprep.subr.mxu0 0.0
      %177 = vmatpush1.msra.mxu0 0.0
      %178 = vmatprep.subr.mxu0 0.0
      %179 = vmatpush1.msra.mxu0 0.0
      %180 = vmatprep.subr.mxu0 0.0
      %181 = vmatpush1.msra.mxu0 0.0
      %182 = vmatprep.subr.mxu0 0.0
      %183 = vmatpush1.msra.mxu0 0.0
      %184 = vmatprep.subr.mxu0 0.0
      %185 = vmatpush1.msra.mxu0 0.0
      %186 = vmatprep.subr.mxu0 0.0
      %187 = vmatpush1.msra.mxu0 0.0
      %188 = vmatprep.subr.mxu0 0.0
      %189 = vmatpush1.msra.mxu0 0.0
      %190 = vmatprep.subr.mxu0 0.0
      %191 = vmatpush1.msra.mxu0 0.0
      %192 = vmatprep.subr.mxu0 0.0
      %193 = vmatpush1.msra.mxu0 0.0
      %194 = vmatprep.subr.mxu0 0.0
      %195 = vmatpush1.msra.mxu0 0.0
      %196 = vmatprep.subr.mxu0 0.0
      %197 = vmatpush1.msra.mxu0 0.0
      %198 = vmatprep.subr.mxu0 0.0
      %199 = vmatpush1.msra.mxu0 0.0
      %200 = vmatprep.subr.mxu0 0.0
      %201 = vmatpush1.msra.mxu0 0.0
      %202 = vmatprep.subr.mxu0 0.0
      %203 = vmatpush1.msra.mxu0 0.0
      %204 = vmatprep.subr.mxu0 0.0
      %205 = vmatpush1.msra.mxu0 0.0
      %206 = vmatprep.subr.mxu0 0.0
      %207 = vmatpush1.msra.mxu0 0.0
      %208 = vmatprep.subr.mxu0 0.0
      %209 = vmatpush1.msra.mxu0 0.0
      %210 = vmatprep.subr.mxu0 0.0
      %211 = vmatpush1.msra.mxu0 0.0
      %212 = vmatprep.subr.mxu0 0.0
      %213 = vmatpush1.msra.mxu0 0.0
      %214 = vmatprep.subr.mxu0 0.0
      %215 = vmatpush1.msra.mxu0 0.0
      %216 = vmatprep.subr.mxu0 0.0
      %217 = vmatpush1.msra.mxu0 0.0
      %218 = vmatprep.subr.mxu0 0.0
      %219 = vmatpush1.msra.mxu0 0.0
      %220 = vmatprep.subr.mxu0 0.0
      %221 = vmatpush1.msra.mxu0 0.0
      %222 = vmatprep.subr.mxu0 0.0
      %223 = vmatpush1.msra.mxu0 0.0
      %224 = vmatprep.subr.mxu0 0.0
      %225 = vmatpush1.msra.mxu0 0.0
      %226 = vmatprep.subr.mxu0 0.0
      %227 = vmatpush1.msra.mxu0 0.0
      %228 = vmatprep.subr.mxu0 0.0
      %229 = vmatpush1.msra.mxu0 0.0
      %230 = vmatprep.subr.mxu0 0.0
      %231 = vmatpush1.msra.mxu0 0.0
      %232 = vmatprep.mubr.f32.mxu0 0.0
      %233 = vmatmul.mubr.f32.gmra.mrb[0].mxu0 %v166
      %v234 = vpop.f32.mrb[0].mxu0
      %v235 = vadd.f32 %v162, %v234
      %v236 = vpop.f32.mrb[0].mxu0
      %237 = vdwg.mxu0
      %v239 = vlaneseq
      %v240 = vshrl.u32 %v239, 7
      %v241 = vsub.s32 0, %v240
      %v242 = vrot.slane %v155, %v241
      %244 = vmatprep.subr.mxu0 0.0
      %245 = vmatpush1.msra.mxu0 %v146
      %246 = vmatprep.subr.mxu0 0.0
      %247 = vmatpush1.msra.mxu0 %v147
      %248 = vmatprep.subr.mxu0 0.0
      %249 = vmatpush1.msra.mxu0 %v148
      %250 = vmatprep.subr.mxu0 0.0
      %251 = vmatpush1.msra.mxu0 %v149
      %252 = vmatprep.subr.mxu0 0.0
      %253 = vmatpush1.msra.mxu0 0.0
      %254 = vmatprep.subr.mxu0 0.0
      %255 = vmatpush1.msra.mxu0 0.0
      %256 = vmatprep.subr.mxu0 0.0
      %257 = vmatpush1.msra.mxu0 0.0
      %258 = vmatprep.subr.mxu0 0.0
      %259 = vmatpush1.msra.mxu0 0.0
      %260 = vmatprep.subr.mxu0 0.0
      %261 = vmatpush1.msra.mxu0 0.0
      %262 = vmatprep.subr.mxu0 0.0
      %263 = vmatpush1.msra.mxu0 0.0
      %264 = vmatprep.subr.mxu0 0.0
      %265 = vmatpush1.msra.mxu0 0.0
      %266 = vmatprep.subr.mxu0 0.0
      %267 = vmatpush1.msra.mxu0 0.0
      %268 = vmatprep.subr.mxu0 0.0
      %269 = vmatpush1.msra.mxu0 0.0
      %270 = vmatprep.subr.mxu0 0.0
      %271 = vmatpush1.msra.mxu0 0.0
      %272 = vmatprep.subr.mxu0 0.0
      %273 = vmatpush1.msra.mxu0 0.0
      %274 = vmatprep.subr.mxu0 0.0
      %275 = vmatpush1.msra.mxu0 0.0
      %276 = vmatprep.subr.mxu0 0.0
      %277 = vmatpush1.msra.mxu0 0.0
      %278 = vmatprep.subr.mxu0 0.0
      %279 = vmatpush1.msra.mxu0 0.0
      %280 = vmatprep.subr.mxu0 0.0
      %281 = vmatpush1.msra.mxu0 0.0
      %282 = vmatprep.subr.mxu0 0.0
      %283 = vmatpush1.msra.mxu0 0.0
      %284 = vmatprep.subr.mxu0 0.0
      %285 = vmatpush1.msra.mxu0 0.0
      %286 = vmatprep.subr.mxu0 0.0
      %287 = vmatpush1.msra.mxu0 0.0
      %288 = vmatprep.subr.mxu0 0.0
      %289 = vmatpush1.msra.mxu0 0.0
      %290 = vmatprep.subr.mxu0 0.0
      %291 = vmatpush1.msra.mxu0 0.0
      %292 = vmatprep.subr.mxu0 0.0
      %293 = vmatpush1.msra.mxu0 0.0
      %294 = vmatprep.subr.mxu0 0.0
      %295 = vmatpush1.msra.mxu0 0.0
      %296 = vmatprep.subr.mxu0 0.0
      %297 = vmatpush1.msra.mxu0 0.0
      %298 = vmatprep.subr.mxu0 0.0
      %299 = vmatpush1.msra.mxu0 0.0
      %300 = vmatprep.subr.mxu0 0.0
      %301 = vmatpush1.msra.mxu0 0.0
      %302 = vmatprep.subr.mxu0 0.0
      %303 = vmatpush1.msra.mxu0 0.0
      %304 = vmatprep.subr.mxu0 0.0
      %305 = vmatpush1.msra.mxu0 0.0
      %306 = vmatprep.subr.mxu0 0.0
      %307 = vmatpush1.msra.mxu0 0.0
      %308 = vmatprep.mubr.f32.mxu0 0.0
      %309 = vmatmul.mubr.f32.gmra.mrb[0].mxu0 %v166
      %v310 = vpop.f32.mrb[0].mxu0
      %v311 = vadd.f32 %v242, %v310
      %v312 = vpop.f32.mrb[0].mxu0
      %313 = vdwg.mxu0
      %v315 = vlaneseq
      %v316 = vshrl.u32 %v315, 7
      %v317 = vsub.s32 0, %v316
      %v318 = vrot.slane %v156, %v317
      %320 = vmatprep.subr.mxu0 0.0
      %321 = vmatpush1.msra.mxu0 %v150
      %322 = vmatprep.subr.mxu0 0.0
      %323 = vmatpush1.msra.mxu0 %v151
      %324 = vmatprep.subr.mxu0 0.0
      %325 = vmatpush1.msra.mxu0 %v152
      %326 = vmatprep.subr.mxu0 0.0
      %327 = vmatpush1.msra.mxu0 %v153
      %328 = vmatprep.subr.mxu0 0.0
      %329 = vmatpush1.msra.mxu0 0.0
      %330 = vmatprep.subr.mxu0 0.0
      %331 = vmatpush1.msra.mxu0 0.0
      %332 = vmatprep.subr.mxu0 0.0
      %333 = vmatpush1.msra.mxu0 0.0
      %334 = vmatprep.subr.mxu0 0.0
      %335 = vmatpush1.msra.mxu0 0.0
      %336 = vmatprep.subr.mxu0 0.0
      %337 = vmatpush1.msra.mxu0 0.0
      %338 = vmatprep.subr.mxu0 0.0
      %339 = vmatpush1.msra.mxu0 0.0
      %340 = vmatprep.subr.mxu0 0.0
      %341 = vmatpush1.msra.mxu0 0.0
      %342 = vmatprep.subr.mxu0 0.0
      %343 = vmatpush1.msra.mxu0 0.0
      %344 = vmatprep.subr.mxu0 0.0
      %345 = vmatpush1.msra.mxu0 0.0
      %346 = vmatprep.subr.mxu0 0.0
      %347 = vmatpush1.msra.mxu0 0.0
      %348 = vmatprep.subr.mxu0 0.0
      %349 = vmatpush1.msra.mxu0 0.0
      %350 = vmatprep.subr.mxu0 0.0
      %351 = vmatpush1.msra.mxu0 0.0
      %352 = vmatprep.subr.mxu0 0.0
      %353 = vmatpush1.msra.mxu0 0.0
      %354 = vmatprep.subr.mxu0 0.0
      %355 = vmatpush1.msra.mxu0 0.0
      %356 = vmatprep.subr.mxu0 0.0
      %357 = vmatpush1.msra.mxu0 0.0
      %358 = vmatprep.subr.mxu0 0.0
      %359 = vmatpush1.msra.mxu0 0.0
      %360 = vmatprep.subr.mxu0 0.0
      %361 = vmatpush1.msra.mxu0 0.0
      %362 = vmatprep.subr.mxu0 0.0
      %363 = vmatpush1.msra.mxu0 0.0
      %364 = vmatprep.subr.mxu0 0.0
      %365 = vmatpush1.msra.mxu0 0.0
      %366 = vmatprep.subr.mxu0 0.0
      %367 = vmatpush1.msra.mxu0 0.0
      %368 = vmatprep.subr.mxu0 0.0
      %369 = vmatpush1.msra.mxu0 0.0
      %370 = vmatprep.subr.mxu0 0.0
      %371 = vmatpush1.msra.mxu0 0.0
      %372 = vmatprep.subr.mxu0 0.0
      %373 = vmatpush1.msra.mxu0 0.0
      %374 = vmatprep.subr.mxu0 0.0
      %375 = vmatpush1.msra.mxu0 0.0
      %376 = vmatprep.subr.mxu0 0.0
      %377 = vmatpush1.msra.mxu0 0.0
      %378 = vmatprep.subr.mxu0 0.0
      %379 = vmatpush1.msra.mxu0 0.0
      %380 = vmatprep.subr.mxu0 0.0
      %381 = vmatpush1.msra.mxu0 0.0
      %382 = vmatprep.subr.mxu0 0.0
      %383 = vmatpush1.msra.mxu0 0.0
      %384 = vmatprep.mubr.f32.mxu0 0.0
      %385 = vmatmul.mubr.f32.gmra.mrb[0].mxu0 %v166
      %v386 = vpop.f32.mrb[0].mxu0
      %v387 = vadd.f32 %v318, %v386
      %v388 = vpop.f32.mrb[0].mxu0
      %389 = vdwg.mxu0
      %v390 = vld [vmem:[#allocation5] sm:$0xff]
      %v391 = vadd.f32 %v390, %v235
      %v392 = vxor.u32 %v391, 2147483648
      %v393 = vmul.f32 %v392, 1.442695
      %v394 = vpow.pop %v393
      %v395 = vadd.f32 %v394, 1.0
      %v396 = vrcp.pop %v395
      %v397 = vmul.f32 1.0, %v396
      %v398 = vld [vmem:[#allocation8] sm:$0xff]
      %v399 = vadd.f32 %v398, %v311
      %v400 = vxor.u32 %v399, 2147483648
      %v401 = vmul.f32 %v400, 1.442695
      %v402 = vpow.pop %v401
      %v403 = vadd.f32 %v402, 1.0
      %v404 = vrcp.pop %v403
      %v405 = vmul.f32 1.0, %v404
      %v406 = vld [vmem:[#allocation10] sm:$0xff]
      %v407 = vmul.f32 %v397, %v387
      %v408 = vadd.f32 %v406, %v407
      %v409 = vtanh.pop %v408
      %v410 = vsub.f32 1.0, %v405
      %v411 = vmul.f32 %v410, %v409
      %v412 = vmul.f32 %v405, %v157
      %v413 = vadd.f32 %v411, %v412
      %414 = vst.msk [vmem:[#allocation16] sm:$0xff] %vm164, %v413
      %v416 = vsel %vm164, %v413, 0
      %418 = vmatprep.subr.mxu0 0.0
      %419 = vmatpush1.msra.mxu0 %v142
      %420 = vmatprep.subr.mxu0 0.0
      %421 = vmatpush1.msra.mxu0 %v143
      %422 = vmatprep.subr.mxu0 0.0
      %423 = vmatpush1.msra.mxu0 %v144
      %424 = vmatprep.subr.mxu0 0.0
      %425 = vmatpush1.msra.mxu0 %v145
      %426 = vmatprep.subr.mxu0 0.0
      %427 = vmatpush1.msra.mxu0 0.0
      %428 = vmatprep.subr.mxu0 0.0
      %429 = vmatpush1.msra.mxu0 0.0
      %430 = vmatprep.subr.mxu0 0.0
      %431 = vmatpush1.msra.mxu0 0.0
      %432 = vmatprep.subr.mxu0 0.0
      %433 = vmatpush1.msra.mxu0 0.0
      %434 = vmatprep.subr.mxu0 0.0
      %435 = vmatpush1.msra.mxu0 0.0
      %436 = vmatprep.subr.mxu0 0.0
      %437 = vmatpush1.msra.mxu0 0.0
      %438 = vmatprep.subr.mxu0 0.0
      %439 = vmatpush1.msra.mxu0 0.0
      %440 = vmatprep.subr.mxu0 0.0
      %441 = vmatpush1.msra.mxu0 0.0
      %442 = vmatprep.subr.mxu0 0.0
      %443 = vmatpush1.msra.mxu0 0.0
      %444 = vmatprep.subr.mxu0 0.0
      %445 = vmatpush1.msra.mxu0 0.0
      %446 = vmatprep.subr.mxu0 0.0
      %447 = vmatpush1.msra.mxu0 0.0
      %448 = vmatprep.subr.mxu0 0.0
      %449 = vmatpush1.msra.mxu0 0.0
      %450 = vmatprep.subr.mxu0 0.0
      %451 = vmatpush1.msra.mxu0 0.0
      %452 = vmatprep.subr.mxu0 0.0
      %453 = vmatpush1.msra.mxu0 0.0
      %454 = vmatprep.subr.mxu0 0.0
      %455 = vmatpush1.msra.mxu0 0.0
      %456 = vmatprep.subr.mxu0 0.0
      %457 = vmatpush1.msra.mxu0 0.0
      %458 = vmatprep.subr.mxu0 0.0
      %459 = vmatpush1.msra.mxu0 0.0
      %460 = vmatprep.subr.mxu0 0.0
      %461 = vmatpush1.msra.mxu0 0.0
      %462 = vmatprep.subr.mxu0 0.0
      %463 = vmatpush1.msra.mxu0 0.0
      %464 = vmatprep.subr.mxu0 0.0
      %465 = vmatpush1.msra.mxu0 0.0
      %466 = vmatprep.subr.mxu0 0.0
      %467 = vmatpush1.msra.mxu0 0.0
      %468 = vmatprep.subr.mxu0 0.0
      %469 = vmatpush1.msra.mxu0 0.0
      %470 = vmatprep.subr.mxu0 0.0
      %471 = vmatpush1.msra.mxu0 0.0
      %472 = vmatprep.subr.mxu0 0.0
      %473 = vmatpush1.msra.mxu0 0.0
      %474 = vmatprep.subr.mxu0 0.0
      %475 = vmatpush1.msra.mxu0 0.0
      %476 = vmatprep.subr.mxu0 0.0
      %477 = vmatpush1.msra.mxu0 0.0
      %478 = vmatprep.subr.mxu0 0.0
      %479 = vmatpush1.msra.mxu0 0.0
      %480 = vmatprep.subr.mxu0 0.0
      %481 = vmatpush1.msra.mxu0 0.0
      %482 = vmatprep.mubr.f32.mxu0 0.0
      %483 = vmatmul.mubr.f32.gmra.mrb[0].mxu0 %v416
      %v484 = vpop.f32.mrb[0].mxu0
      %v485 = vadd.f32 %v162, %v484
      %v486 = vpop.f32.mrb[0].mxu0
      %487 = vdwg.mxu0
      %488 = vmatprep.subr.mxu0 0.0
      %489 = vmatpush1.msra.mxu0 %v146
      %490 = vmatprep.subr.mxu0 0.0
      %491 = vmatpush1.msra.mxu0 %v147
      %492 = vmatprep.subr.mxu0 0.0
      %493 = vmatpush1.msra.mxu0 %v148
      %494 = vmatprep.subr.mxu0 0.0
      %495 = vmatpush1.msra.mxu0 %v149
      %496 = vmatprep.subr.mxu0 0.0
      %497 = vmatpush1.msra.mxu0 0.0
      %498 = vmatprep.subr.mxu0 0.0
      %499 = vmatpush1.msra.mxu0 0.0
      %500 = vmatprep.subr.mxu0 0.0
      %501 = vmatpush1.msra.mxu0 0.0
      %502 = vmatprep.subr.mxu0 0.0
      %503 = vmatpush1.msra.mxu0 0.0
      %504 = vmatprep.subr.mxu0 0.0
      %505 = vmatpush1.msra.mxu0 0.0
      %506 = vmatprep.subr.mxu0 0.0
      %507 = vmatpush1.msra.mxu0 0.0
      %508 = vmatprep.subr.mxu0 0.0
      %509 = vmatpush1.msra.mxu0 0.0
      %510 = vmatprep.subr.mxu0 0.0
      %511 = vmatpush1.msra.mxu0 0.0
      %512 = vmatprep.subr.mxu0 0.0
      %513 = vmatpush1.msra.mxu0 0.0
      %514 = vmatprep.subr.mxu0 0.0
      %515 = vmatpush1.msra.mxu0 0.0
      %516 = vmatprep.subr.mxu0 0.0
      %517 = vmatpush1.msra.mxu0 0.0
      %518 = vmatprep.subr.mxu0 0.0
      %519 = vmatpush1.msra.mxu0 0.0
      %520 = vmatprep.subr.mxu0 0.0
      %521 = vmatpush1.msra.mxu0 0.0
      %522 = vmatprep.subr.mxu0 0.0
      %523 = vmatpush1.msra.mxu0 0.0
      %524 = vmatprep.subr.mxu0 0.0
      %525 = vmatpush1.msra.mxu0 0.0
      %526 = vmatprep.subr.mxu0 0.0
      %527 = vmatpush1.msra.mxu0 0.0
      %528 = vmatprep.subr.mxu0 0.0
      %529 = vmatpush1.msra.mxu0 0.0
      %530 = vmatprep.subr.mxu0 0.0
      %531 = vmatpush1.msra.mxu0 0.0
      %532 = vmatprep.subr.mxu0 0.0
      %533 = vmatpush1.msra.mxu0 0.0
      %534 = vmatprep.subr.mxu0 0.0
      %535 = vmatpush1.msra.mxu0 0.0
      %536 = vmatprep.subr.mxu0 0.0
      %537 = vmatpush1.msra.mxu0 0.0
      %538 = vmatprep.subr.mxu0 0.0
      %539 = vmatpush1.msra.mxu0 0.0
      %540 = vmatprep.subr.mxu0 0.0
      %541 = vmatpush1.msra.mxu0 0.0
      %542 = vmatprep.subr.mxu0 0.0
      %543 = vmatpush1.msra.mxu0 0.0
      %544 = vmatprep.subr.mxu0 0.0
      %545 = vmatpush1.msra.mxu0 0.0
      %546 = vmatprep.subr.mxu0 0.0
      %547 = vmatpush1.msra.mxu0 0.0
      %548 = vmatprep.subr.mxu0 0.0
      %549 = vmatpush1.msra.mxu0 0.0
      %550 = vmatprep.subr.mxu0 0.0
      %551 = vmatpush1.msra.mxu0 0.0
      %552 = vmatprep.mubr.f32.mxu0 0.0
      %553 = vmatmul.mubr.f32.gmra.mrb[0].mxu0 %v416
      %v554 = vpop.f32.mrb[0].mxu0
      %v555 = vadd.f32 %v242, %v554
      %v556 = vpop.f32.mrb[0].mxu0
      %557 = vdwg.mxu0
      %558 = vmatprep.subr.mxu0 0.0
      %559 = vmatpush1.msra.mxu0 %v150
      %560 = vmatprep.subr.mxu0 0.0
      %561 = vmatpush1.msra.mxu0 %v151
      %562 = vmatprep.subr.mxu0 0.0
      %563 = vmatpush1.msra.mxu0 %v152
      %564 = vmatprep.subr.mxu0 0.0
      %565 = vmatpush1.msra.mxu0 %v153
      %566 = vmatprep.subr.mxu0 0.0
      %567 = vmatpush1.msra.mxu0 0.0
      %568 = vmatprep.subr.mxu0 0.0
      %569 = vmatpush1.msra.mxu0 0.0
      %570 = vmatprep.subr.mxu0 0.0
      %571 = vmatpush1.msra.mxu0 0.0
      %572 = vmatprep.subr.mxu0 0.0
      %573 = vmatpush1.msra.mxu0 0.0
      %574 = vmatprep.subr.mxu0 0.0
      %575 = vmatpush1.msra.mxu0 0.0
      %576 = vmatprep.subr.mxu0 0.0
      %577 = vmatpush1.msra.mxu0 0.0
      %578 = vmatprep.subr.mxu0 0.0
      %579 = vmatpush1.msra.mxu0 0.0
      %580 = vmatprep.subr.mxu0 0.0
      %581 = vmatpush1.msra.mxu0 0.0
      %582 = vmatprep.subr.mxu0 0.0
      %583 = vmatpush1.msra.mxu0 0.0
      %584 = vmatprep.subr.mxu0 0.0
      %585 = vmatpush1.msra.mxu0 0.0
      %586 = vmatprep.subr.mxu0 0.0
      %587 = vmatpush1.msra.mxu0 0.0
      %588 = vmatprep.subr.mxu0 0.0
      %589 = vmatpush1.msra.mxu0 0.0
      %590 = vmatprep.subr.mxu0 0.0
      %591 = vmatpush1.msra.mxu0 0.0
      %592 = vmatprep.subr.mxu0 0.0
      %593 = vmatpush1.msra.mxu0 0.0
      %594 = vmatprep.subr.mxu0 0.0
      %595 = vmatpush1.msra.mxu0 0.0
      %596 = vmatprep.subr.mxu0 0.0
      %597 = vmatpush1.msra.mxu0 0.0
      %598 = vmatprep.subr.mxu0 0.0
      %599 = vmatpush1.msra.mxu0 0.0
      %600 = vmatprep.subr.mxu0 0.0
      %601 = vmatpush1.msra.mxu0 0.0
      %602 = vmatprep.subr.mxu0 0.0
      %603 = vmatpush1.msra.mxu0 0.0
      %604 = vmatprep.subr.mxu0 0.0
      %605 = vmatpush1.msra.mxu0 0.0
      %606 = vmatprep.subr.mxu0 0.0
      %607 = vmatpush1.msra.mxu0 0.0
      %608 = vmatprep.subr.mxu0 0.0
      %609 = vmatpush1.msra.mxu0 0.0
      %610 = vmatprep.subr.mxu0 0.0
      %611 = vmatpush1.msra.mxu0 0.0
      %612 = vmatprep.subr.mxu0 0.0
      %613 = vmatpush1.msra.mxu0 0.0
      %614 = vmatprep.subr.mxu0 0.0
      %615 = vmatpush1.msra.mxu0 0.0
      %616 = vmatprep.subr.mxu0 0.0
      %617 = vmatpush1.msra.mxu0 0.0
      %618 = vmatprep.subr.mxu0 0.0
      %619 = vmatpush1.msra.mxu0 0.0
      %620 = vmatprep.subr.mxu0 0.0
      %621 = vmatpush1.msra.mxu0 0.0
      %622 = vmatprep.mubr.f32.mxu0 0.0
      %623 = vmatmul.mubr.f32.gmra.mrb[0].mxu0 %v416
      %v624 = vpop.f32.mrb[0].mxu0
      %v625 = vadd.f32 %v318, %v624
      %v626 = vpop.f32.mrb[0].mxu0
      %627 = vdwg.mxu0
      %s628 = scalar_lea.vmem [#allocation5], 8
      %v629 = vld [vmem:[%s628] sm:$0xff]
      %v630 = vadd.f32 %v629, %v485
      %v631 = vxor.u32 %v630, 2147483648
      %v632 = vmul.f32 %v631, 1.442695
      %v633 = vpow.pop %v632
      %v634 = vadd.f32 %v633, 1.0
      %v635 = vrcp.pop %v634
      %v636 = vmul.f32 1.0, %v635
      %s637 = scalar_lea.vmem [#allocation8], 8
      %v638 = vld [vmem:[%s637] sm:$0xff]
      %v639 = vadd.f32 %v638, %v555
      %v640 = vxor.u32 %v639, 2147483648
      %v641 = vmul.f32 %v640, 1.442695
      %v642 = vpow.pop %v641
      %v643 = vadd.f32 %v642, 1.0
      %v644 = vrcp.pop %v643
      %v645 = vmul.f32 1.0, %v644
      %s646 = scalar_lea.vmem [#allocation10], 8
      %v647 = vld [vmem:[%s646] sm:$0xff]
      %v648 = vmul.f32 %v636, %v625
      %v649 = vadd.f32 %v647, %v648
      %v650 = vtanh.pop %v649
      %v651 = vsub.f32 1.0, %v645
      %v652 = vmul.f32 %v651, %v650
      %v653 = vmul.f32 %v645, %v413
      %v654 = vadd.f32 %v652, %v653
      %s655 = scalar_lea.vmem [#allocation16], 8
      %656 = vst.msk [vmem:[%s655] sm:$0xff] %vm164, %v654
      %v658 = vsel %vm164, %v654, 0
      %660 = vmatprep.subr.mxu0 0.0
      %661 = vmatpush1.msra.mxu0 %v142
      %662 = vmatprep.subr.mxu0 0.0
      %663 = vmatpush1.msra.mxu0 %v143
      %664 = vmatprep.subr.mxu0 0.0
      %665 = vmatpush1.msra.mxu0 %v144
      %666 = vmatprep.subr.mxu0 0.0
      %667 = vmatpush1.msra.mxu0 %v145
      %668 = vmatprep.subr.mxu0 0.0
      %669 = vmatpush1.msra.mxu0 0.0
      %670 = vmatprep.subr.mxu0 0.0
      %671 = vmatpush1.msra.mxu0 0.0
      %672 = vmatprep.subr.mxu0 0.0
      %673 = vmatpush1.msra.mxu0 0.0
      %674 = vmatprep.subr.mxu0 0.0
      %675 = vmatpush1.msra.mxu0 0.0
      %676 = vmatprep.subr.mxu0 0.0
      %677 = vmatpush1.msra.mxu0 0.0
      %678 = vmatprep.subr.mxu0 0.0
      %679 = vmatpush1.msra.mxu0 0.0
      %680 = vmatprep.subr.mxu0 0.0
      %681 = vmatpush1.msra.mxu0 0.0
      %682 = vmatprep.subr.mxu0 0.0
      %683 = vmatpush1.msra.mxu0 0.0
      %684 = vmatprep.subr.mxu0 0.0
      %685 = vmatpush1.msra.mxu0 0.0
      %686 = vmatprep.subr.mxu0 0.0
      %687 = vmatpush1.msra.mxu0 0.0
      %688 = vmatprep.subr.mxu0 0.0
      %689 = vmatpush1.msra.mxu0 0.0
      %690 = vmatprep.subr.mxu0 0.0
      %691 = vmatpush1.msra.mxu0 0.0
      %692 = vmatprep.subr.mxu0 0.0
      %693 = vmatpush1.msra.mxu0 0.0
      %694 = vmatprep.subr.mxu0 0.0
      %695 = vmatpush1.msra.mxu0 0.0
      %696 = vmatprep.subr.mxu0 0.0
      %697 = vmatpush1.msra.mxu0 0.0
      %698 = vmatprep.subr.mxu0 0.0
      %699 = vmatpush1.msra.mxu0 0.0
      %700 = vmatprep.subr.mxu0 0.0
      %701 = vmatpush1.msra.mxu0 0.0
      %702 = vmatprep.subr.mxu0 0.0
      %703 = vmatpush1.msra.mxu0 0.0
      %704 = vmatprep.subr.mxu0 0.0
      %705 = vmatpush1.msra.mxu0 0.0
      %706 = vmatprep.subr.mxu0 0.0
      %707 = vmatpush1.msra.mxu0 0.0
      %708 = vmatprep.subr.mxu0 0.0
      %709 = vmatpush1.msra.mxu0 0.0
      %710 = vmatprep.subr.mxu0 0.0
      %711 = vmatpush1.msra.mxu0 0.0
      %712 = vmatprep.subr.mxu0 0.0
      %713 = vmatpush1.msra.mxu0 0.0
      %714 = vmatprep.subr.mxu0 0.0
      %715 = vmatpush1.msra.mxu0 0.0
      %716 = vmatprep.subr.mxu0 0.0
      %717 = vmatpush1.msra.mxu0 0.0
      %718 = vmatprep.subr.mxu0 0.0
      %719 = vmatpush1.msra.mxu0 0.0
      %720 = vmatprep.subr.mxu0 0.0
      %721 = vmatpush1.msra.mxu0 0.0
      %722 = vmatprep.subr.mxu0 0.0
      %723 = vmatpush1.msra.mxu0 0.0
      %724 = vmatprep.mubr.f32.mxu0 0.0
      %725 = vmatmul.mubr.f32.gmra.mrb[0].mxu0 %v658
      %v726 = vpop.f32.mrb[0].mxu0
      %v727 = vadd.f32 %v162, %v726
      %v728 = vpop.f32.mrb[0].mxu0
      %729 = vdwg.mxu0
      %730 = vmatprep.subr.mxu0 0.0
      %731 = vmatpush1.msra.mxu0 %v146
      %732 = vmatprep.subr.mxu0 0.0
      %733 = vmatpush1.msra.mxu0 %v147
      %734 = vmatprep.subr.mxu0 0.0
      %735 = vmatpush1.msra.mxu0 %v148
      %736 = vmatprep.subr.mxu0 0.0
      %737 = vmatpush1.msra.mxu0 %v149
      %738 = vmatprep.subr.mxu0 0.0
      %739 = vmatpush1.msra.mxu0 0.0
      %740 = vmatprep.subr.mxu0 0.0
      %741 = vmatpush1.msra.mxu0 0.0
      %742 = vmatprep.subr.mxu0 0.0
      %743 = vmatpush1.msra.mxu0 0.0
      %744 = vmatprep.subr.mxu0 0.0
      %745 = vmatpush1.msra.mxu0 0.0
      %746 = vmatprep.subr.mxu0 0.0
      %747 = vmatpush1.msra.mxu0 0.0
      %748 = vmatprep.subr.mxu0 0.0
      %749 = vmatpush1.msra.mxu0 0.0
      %750 = vmatprep.subr.mxu0 0.0
      %751 = vmatpush1.msra.mxu0 0.0
      %752 = vmatprep.subr.mxu0 0.0
      %753 = vmatpush1.msra.mxu0 0.0
      %754 = vmatprep.subr.mxu0 0.0
      %755 = vmatpush1.msra.mxu0 0.0
      %756 = vmatprep.subr.mxu0 0.0
      %757 = vmatpush1.msra.mxu0 0.0
      %758 = vmatprep.subr.mxu0 0.0
      %759 = vmatpush1.msra.mxu0 0.0
      %760 = vmatprep.subr.mxu0 0.0
      %761 = vmatpush1.msra.mxu0 0.0
      %762 = vmatprep.subr.mxu0 0.0
      %763 = vmatpush1.msra.mxu0 0.0
      %764 = vmatprep.subr.mxu0 0.0
      %765 = vmatpush1.msra.mxu0 0.0
      %766 = vmatprep.subr.mxu0 0.0
      %767 = vmatpush1.msra.mxu0 0.0
      %768 = vmatprep.subr.mxu0 0.0
      %769 = vmatpush1.msra.mxu0 0.0
      %770 = vmatprep.subr.mxu0 0.0
      %771 = vmatpush1.msra.mxu0 0.0
      %772 = vmatprep.subr.mxu0 0.0
      %773 = vmatpush1.msra.mxu0 0.0
      %774 = vmatprep.subr.mxu0 0.0
      %775 = vmatpush1.msra.mxu0 0.0
      %776 = vmatprep.subr.mxu0 0.0
      %777 = vmatpush1.msra.mxu0 0.0
      %778 = vmatprep.subr.mxu0 0.0
      %779 = vmatpush1.msra.mxu0 0.0
      %780 = vmatprep.subr.mxu0 0.0
      %781 = vmatpush1.msra.mxu0 0.0
      %782 = vmatprep.subr.mxu0 0.0
      %783 = vmatpush1.msra.mxu0 0.0
      %784 = vmatprep.subr.mxu0 0.0
      %785 = vmatpush1.msra.mxu0 0.0
      %786 = vmatprep.subr.mxu0 0.0
      %787 = vmatpush1.msra.mxu0 0.0
      %788 = vmatprep.subr.mxu0 0.0
      %789 = vmatpush1.msra.mxu0 0.0
      %790 = vmatprep.subr.mxu0 0.0
      %791 = vmatpush1.msra.mxu0 0.0
      %792 = vmatprep.subr.mxu0 0.0
      %793 = vmatpush1.msra.mxu0 0.0
      %794 = vmatprep.mubr.f32.mxu0 0.0
      %795 = vmatmul.mubr.f32.gmra.mrb[0].mxu0 %v658
      %v796 = vpop.f32.mrb[0].mxu0
      %v797 = vadd.f32 %v242, %v796
      %v798 = vpop.f32.mrb[0].mxu0
      %799 = vdwg.mxu0
      %800 = vmatprep.subr.mxu0 0.0
      %801 = vmatpush1.msra.mxu0 %v150
      %802 = vmatprep.subr.mxu0 0.0
      %803 = vmatpush1.msra.mxu0 %v151
      %804 = vmatprep.subr.mxu0 0.0
      %805 = vmatpush1.msra.mxu0 %v152
      %806 = vmatprep.subr.mxu0 0.0
      %807 = vmatpush1.msra.mxu0 %v153
      %808 = vmatprep.subr.mxu0 0.0
      %809 = vmatpush1.msra.mxu0 0.0
      %810 = vmatprep.subr.mxu0 0.0
      %811 = vmatpush1.msra.mxu0 0.0
      %812 = vmatprep.subr.mxu0 0.0
      %813 = vmatpush1.msra.mxu0 0.0
      %814 = vmatprep.subr.mxu0 0.0
      %815 = vmatpush1.msra.mxu0 0.0
      %816 = vmatprep.subr.mxu0 0.0
      %817 = vmatpush1.msra.mxu0 0.0
      %818 = vmatprep.subr.mxu0 0.0
      %819 = vmatpush1.msra.mxu0 0.0
      %820 = vmatprep.subr.mxu0 0.0
      %821 = vmatpush1.msra.mxu0 0.0
      %822 = vmatprep.subr.mxu0 0.0
      %823 = vmatpush1.msra.mxu0 0.0
      %824 = vmatprep.subr.mxu0 0.0
      %825 = vmatpush1.msra.mxu0 0.0
      %826 = vmatprep.subr.mxu0 0.0
      %827 = vmatpush1.msra.mxu0 0.0
      %828 = vmatprep.subr.mxu0 0.0
      %829 = vmatpush1.msra.mxu0 0.0
      %830 = vmatprep.subr.mxu0 0.0
      %831 = vmatpush1.msra.mxu0 0.0
      %832 = vmatprep.subr.mxu0 0.0
      %833 = vmatpush1.msra.mxu0 0.0
      %834 = vmatprep.subr.mxu0 0.0
      %835 = vmatpush1.msra.mxu0 0.0
      %836 = vmatprep.subr.mxu0 0.0
      %837 = vmatpush1.msra.mxu0 0.0
      %838 = vmatprep.subr.mxu0 0.0
      %839 = vmatpush1.msra.mxu0 0.0
      %840 = vmatprep.subr.mxu0 0.0
      %841 = vmatpush1.msra.mxu0 0.0
      %842 = vmatprep.subr.mxu0 0.0
      %843 = vmatpush1.msra.mxu0 0.0
      %844 = vmatprep.subr.mxu0 0.0
      %845 = vmatpush1.msra.mxu0 0.0
      %846 = vmatprep.subr.mxu0 0.0
      %847 = vmatpush1.msra.mxu0 0.0
      %848 = vmatprep.subr.mxu0 0.0
      %849 = vmatpush1.msra.mxu0 0.0
      %850 = vmatprep.subr.mxu0 0.0
      %851 = vmatpush1.msra.mxu0 0.0
      %852 = vmatprep.subr.mxu0 0.0
      %853 = vmatpush1.msra.mxu0 0.0
      %854 = vmatprep.subr.mxu0 0.0
      %855 = vmatpush1.msra.mxu0 0.0
      %856 = vmatprep.subr.mxu0 0.0
      %857 = vmatpush1.msra.mxu0 0.0
      %858 = vmatprep.subr.mxu0 0.0
      %859 = vmatpush1.msra.mxu0 0.0
      %860 = vmatprep.subr.mxu0 0.0
      %861 = vmatpush1.msra.mxu0 0.0
      %862 = vmatprep.subr.mxu0 0.0
      %863 = vmatpush1.msra.mxu0 0.0
      %864 = vmatprep.mubr.f32.mxu0 0.0
      %865 = vmatmul.mubr.f32.gmra.mrb[0].mxu0 %v658
      %v866 = vpop.f32.mrb[0].mxu0
      %v867 = vadd.f32 %v318, %v866
      %v868 = vpop.f32.mrb[0].mxu0
      %869 = vdwg.mxu0
      %s870 = scalar_lea.vmem [#allocation5], 16
      %v871 = vld [vmem:[%s870] sm:$0xff]
      %v872 = vadd.f32 %v871, %v727
      %v873 = vxor.u32 %v872, 2147483648
      %v874 = vmul.f32 %v873, 1.442695
      %v875 = vpow.pop %v874
      %v876 = vadd.f32 %v875, 1.0
      %v877 = vrcp.pop %v876
      %v878 = vmul.f32 1.0, %v877
      %s879 = scalar_lea.vmem [#allocation8], 16
      %v880 = vld [vmem:[%s879] sm:$0xff]
      %v881 = vadd.f32 %v880, %v797
      %v882 = vxor.u32 %v881, 2147483648
      %v883 = vmul.f32 %v882, 1.442695
      %v884 = vpow.pop %v883
      %v885 = vadd.f32 %v884, 1.0
      %v886 = vrcp.pop %v885
      %v887 = vmul.f32 1.0, %v886
      %s888 = scalar_lea.vmem [#allocation10], 16
      %v889 = vld [vmem:[%s888] sm:$0xff]
      %v890 = vmul.f32 %v878, %v867
      %v891 = vadd.f32 %v889, %v890
      %v892 = vtanh.pop %v891
      %v893 = vsub.f32 1.0, %v887
      %v894 = vmul.f32 %v893, %v892
      %v895 = vmul.f32 %v887, %v654
      %v896 = vadd.f32 %v894, %v895
      %s897 = scalar_lea.vmem [#allocation16], 16
      %898 = vst.msk [vmem:[%s897] sm:$0xff] %vm164, %v896
      %v900 = vsel %vm164, %v896, 0
      %902 = vmatprep.subr.mxu0 0.0
      %903 = vmatpush1.msra.mxu0 %v142
      %904 = vmatprep.subr.mxu0 0.0
      %905 = vmatpush1.msra.mxu0 %v143
      %906 = vmatprep.subr.mxu0 0.0
      %907 = vmatpush1.msra.mxu0 %v144
      %908 = vmatprep.subr.mxu0 0.0
      %909 = vmatpush1.msra.mxu0 %v145
      %910 = vmatprep.subr.mxu0 0.0
      %911 = vmatpush1.msra.mxu0 0.0
      %912 = vmatprep.subr.mxu0 0.0
      %913 = vmatpush1.msra.mxu0 0.0
      %914 = vmatprep.subr.mxu0 0.0
      %915 = vmatpush1.msra.mxu0 0.0
      %916 = vmatprep.subr.mxu0 0.0
      %917 = vmatpush1.msra.mxu0 0.0
      %918 = vmatprep.subr.mxu0 0.0
      %919 = vmatpush1.msra.mxu0 0.0
      %920 = vmatprep.subr.mxu0 0.0
      %921 = vmatpush1.msra.mxu0 0.0
      %922 = vmatprep.subr.mxu0 0.0
      %923 = vmatpush1.msra.mxu0 0.0
      %924 = vmatprep.subr.mxu0 0.0
      %925 = vmatpush1.msra.mxu0 0.0
      %926 = vmatprep.subr.mxu0 0.0
      %927 = vmatpush1.msra.mxu0 0.0
      %928 = vmatprep.subr.mxu0 0.0
      %929 = vmatpush1.msra.mxu0 0.0
      %930 = vmatprep.subr.mxu0 0.0
      %931 = vmatpush1.msra.mxu0 0.0
      %932 = vmatprep.subr.mxu0 0.0
      %933 = vmatpush1.msra.mxu0 0.0
      %934 = vmatprep.subr.mxu0 0.0
      %935 = vmatpush1.msra.mxu0 0.0
      %936 = vmatprep.subr.mxu0 0.0
      %937 = vmatpush1.msra.mxu0 0.0
      %938 = vmatprep.subr.mxu0 0.0
      %939 = vmatpush1.msra.mxu0 0.0
      %940 = vmatprep.subr.mxu0 0.0
      %941 = vmatpush1.msra.mxu0 0.0
      %942 = vmatprep.subr.mxu0 0.0
      %943 = vmatpush1.msra.mxu0 0.0
      %944 = vmatprep.subr.mxu0 0.0
      %945 = vmatpush1.msra.mxu0 0.0
      %946 = vmatprep.subr.mxu0 0.0
      %947 = vmatpush1.msra.mxu0 0.0
      %948 = vmatprep.subr.mxu0 0.0
      %949 = vmatpush1.msra.mxu0 0.0
      %950 = vmatprep.subr.mxu0 0.0
      %951 = vmatpush1.msra.mxu0 0.0
      %952 = vmatprep.subr.mxu0 0.0
      %953 = vmatpush1.msra.mxu0 0.0
      %954 = vmatprep.subr.mxu0 0.0
      %955 = vmatpush1.msra.mxu0 0.0
      %956 = vmatprep.subr.mxu0 0.0
      %957 = vmatpush1.msra.mxu0 0.0
      %958 = vmatprep.subr.mxu0 0.0
      %959 = vmatpush1.msra.mxu0 0.0
      %960 = vmatprep.subr.mxu0 0.0
      %961 = vmatpush1.msra.mxu0 0.0
      %962 = vmatprep.subr.mxu0 0.0
      %963 = vmatpush1.msra.mxu0 0.0
      %964 = vmatprep.subr.mxu0 0.0
      %965 = vmatpush1.msra.mxu0 0.0
      %966 = vmatprep.mubr.f32.mxu0 0.0
      %967 = vmatmul.mubr.f32.gmra.mrb[0].mxu0 %v900
      %v968 = vpop.f32.mrb[0].mxu0
      %v969 = vadd.f32 %v162, %v968
      %v970 = vpop.f32.mrb[0].mxu0
      %971 = vdwg.mxu0
      %972 = vmatprep.subr.mxu0 0.0
      %973 = vmatpush1.msra.mxu0 %v146
      %974 = vmatprep.subr.mxu0 0.0
      %975 = vmatpush1.msra.mxu0 %v147
      %976 = vmatprep.subr.mxu0 0.0
      %977 = vmatpush1.msra.mxu0 %v148
      %978 = vmatprep.subr.mxu0 0.0
      %979 = vmatpush1.msra.mxu0 %v149
      %980 = vmatprep.subr.mxu0 0.0
      %981 = vmatpush1.msra.mxu0 0.0
      %982 = vmatprep.subr.mxu0 0.0
      %983 = vmatpush1.msra.mxu0 0.0
      %984 = vmatprep.subr.mxu0 0.0
      %985 = vmatpush1.msra.mxu0 0.0
      %986 = vmatprep.subr.mxu0 0.0
      %987 = vmatpush1.msra.mxu0 0.0
      %988 = vmatprep.subr.mxu0 0.0
      %989 = vmatpush1.msra.mxu0 0.0
      %990 = vmatprep.subr.mxu0 0.0
      %991 = vmatpush1.msra.mxu0 0.0
      %992 = vmatprep.subr.mxu0 0.0
      %993 = vmatpush1.msra.mxu0 0.0
      %994 = vmatprep.subr.mxu0 0.0
      %995 = vmatpush1.msra.mxu0 0.0
      %996 = vmatprep.subr.mxu0 0.0
      %997 = vmatpush1.msra.mxu0 0.0
      %998 = vmatprep.subr.mxu0 0.0
      %999 = vmatpush1.msra.mxu0 0.0
      %1000 = vmatprep.subr.mxu0 0.0
      %1001 = vmatpush1.msra.mxu0 0.0
      %1002 = vmatprep.subr.mxu0 0.0
      %1003 = vmatpush1.msra.mxu0 0.0
      %1004 = vmatprep.subr.mxu0 0.0
      %1005 = vmatpush1.msra.mxu0 0.0
      %1006 = vmatprep.subr.mxu0 0.0
      %1007 = vmatpush1.msra.mxu0 0.0
      %1008 = vmatprep.subr.mxu0 0.0
      %1009 = vmatpush1.msra.mxu0 0.0
      %1010 = vmatprep.subr.mxu0 0.0
      %1011 = vmatpush1.msra.mxu0 0.0
      %1012 = vmatprep.subr.mxu0 0.0
      %1013 = vmatpush1.msra.mxu0 0.0
      %1014 = vmatprep.subr.mxu0 0.0
      %1015 = vmatpush1.msra.mxu0 0.0
      %1016 = vmatprep.subr.mxu0 0.0
      %1017 = vmatpush1.msra.mxu0 0.0
      %1018 = vmatprep.subr.mxu0 0.0
      %1019 = vmatpush1.msra.mxu0 0.0
      %1020 = vmatprep.subr.mxu0 0.0
      %1021 = vmatpush1.msra.mxu0 0.0
      %1022 = vmatprep.subr.mxu0 0.0
      %1023 = vmatpush1.msra.mxu0 0.0
      %1024 = vmatprep.subr.mxu0 0.0
      %1025 = vmatpush1.msra.mxu0 0.0
      %1026 = vmatprep.subr.mxu0 0.0
      %1027 = vmatpush1.msra.mxu0 0.0
      %1028 = vmatprep.subr.mxu0 0.0
      %1029 = vmatpush1.msra.mxu0 0.0
      %1030 = vmatprep.subr.mxu0 0.0
      %1031 = vmatpush1.msra.mxu0 0.0
      %1032 = vmatprep.subr.mxu0 0.0
      %1033 = vmatpush1.msra.mxu0 0.0
      %1034 = vmatprep.subr.mxu0 0.0
      %1035 = vmatpush1.msra.mxu0 0.0
      %1036 = vmatprep.mubr.f32.mxu0 0.0
      %1037 = vmatmul.mubr.f32.gmra.mrb[0].mxu0 %v900
      %v1038 = vpop.f32.mrb[0].mxu0
      %v1039 = vadd.f32 %v242, %v1038
      %v1040 = vpop.f32.mrb[0].mxu0
      %1041 = vdwg.mxu0
      %1042 = vmatprep.subr.mxu0 0.0
      %1043 = vmatpush1.msra.mxu0 %v150
      %1044 = vmatprep.subr.mxu0 0.0
      %1045 = vmatpush1.msra.mxu0 %v151
      %1046 = vmatprep.subr.mxu0 0.0
      %1047 = vmatpush1.msra.mxu0 %v152
      %1048 = vmatprep.subr.mxu0 0.0
      %1049 = vmatpush1.msra.mxu0 %v153
      %1050 = vmatprep.subr.mxu0 0.0
      %1051 = vmatpush1.msra.mxu0 0.0
      %1052 = vmatprep.subr.mxu0 0.0
      %1053 = vmatpush1.msra.mxu0 0.0
      %1054 = vmatprep.subr.mxu0 0.0
      %1055 = vmatpush1.msra.mxu0 0.0
      %1056 = vmatprep.subr.mxu0 0.0
      %1057 = vmatpush1.msra.mxu0 0.0
      %1058 = vmatprep.subr.mxu0 0.0
      %1059 = vmatpush1.msra.mxu0 0.0
      %1060 = vmatprep.subr.mxu0 0.0
      %1061 = vmatpush1.msra.mxu0 0.0
      %1062 = vmatprep.subr.mxu0 0.0
      %1063 = vmatpush1.msra.mxu0 0.0
      %1064 = vmatprep.subr.mxu0 0.0
      %1065 = vmatpush1.msra.mxu0 0.0
      %1066 = vmatprep.subr.mxu0 0.0
      %1067 = vmatpush1.msra.mxu0 0.0
      %1068 = vmatprep.subr.mxu0 0.0
      %1069 = vmatpush1.msra.mxu0 0.0
      %1070 = vmatprep.subr.mxu0 0.0
      %1071 = vmatpush1.msra.mxu0 0.0
      %1072 = vmatprep.subr.mxu0 0.0
      %1073 = vmatpush1.msra.mxu0 0.0
      %1074 = vmatprep.subr.mxu0 0.0
      %1075 = vmatpush1.msra.mxu0 0.0
      %1076 = vmatprep.subr.mxu0 0.0
      %1077 = vmatpush1.msra.mxu0 0.0
      %1078 = vmatprep.subr.mxu0 0.0
      %1079 = vmatpush1.msra.mxu0 0.0
      %1080 = vmatprep.subr.mxu0 0.0
      %1081 = vmatpush1.msra.mxu0 0.0
      %1082 = vmatprep.subr.mxu0 0.0
      %1083 = vmatpush1.msra.mxu0 0.0
      %1084 = vmatprep.subr.mxu0 0.0
      %1085 = vmatpush1.msra.mxu0 0.0
      %1086 = vmatprep.subr.mxu0 0.0
      %1087 = vmatpush1.msra.mxu0 0.0
      %1088 = vmatprep.subr.mxu0 0.0
      %1089 = vmatpush1.msra.mxu0 0.0
      %1090 = vmatprep.subr.mxu0 0.0
      %1091 = vmatpush1.msra.mxu0 0.0
      %1092 = vmatprep.subr.mxu0 0.0
      %1093 = vmatpush1.msra.mxu0 0.0
      %1094 = vmatprep.subr.mxu0 0.0
      %1095 = vmatpush1.msra.mxu0 0.0
      %1096 = vmatprep.subr.mxu0 0.0
      %1097 = vmatpush1.msra.mxu0 0.0
      %1098 = vmatprep.subr.mxu0 0.0
      %1099 = vmatpush1.msra.mxu0 0.0
      %1100 = vmatprep.subr.mxu0 0.0
      %1101 = vmatpush1.msra.mxu0 0.0
      %1102 = vmatprep.subr.mxu0 0.0
      %1103 = vmatpush1.msra.mxu0 0.0
      %1104 = vmatprep.subr.mxu0 0.0
      %1105 = vmatpush1.msra.mxu0 0.0
      %1106 = vmatprep.mubr.f32.mxu0 0.0
      %1107 = vmatmul.mubr.f32.gmra.mrb[0].mxu0 %v900
      %v1108 = vpop.f32.mrb[0].mxu0
      %v1109 = vadd.f32 %v318, %v1108
      %v1110 = vpop.f32.mrb[0].mxu0
      %1111 = vdwg.mxu0
      %s1112 = scalar_lea.vmem [#allocation5], 24
      %v1113 = vld [vmem:[%s1112] sm:$0xff]
      %v1114 = vadd.f32 %v1113, %v969
      %v1115 = vxor.u32 %v1114, 2147483648
      %v1116 = vmul.f32 %v1115, 1.442695
      %v1117 = vpow.pop %v1116
      %v1118 = vadd.f32 %v1117, 1.0
      %v1119 = vrcp.pop %v1118
      %v1120 = vmul.f32 1.0, %v1119
      %s1121 = scalar_lea.vmem [#allocation8], 24
      %v1122 = vld [vmem:[%s1121] sm:$0xff]
      %v1123 = vadd.f32 %v1122, %v1039
      %v1124 = vxor.u32 %v1123, 2147483648
      %v1125 = vmul.f32 %v1124, 1.442695
      %v1126 = vpow.pop %v1125
      %v1127 = vadd.f32 %v1126, 1.0
      %v1128 = vrcp.pop %v1127
      %v1129 = vmul.f32 1.0, %v1128
      %s1130 = scalar_lea.vmem [#allocation10], 24
      %v1131 = vld [vmem:[%s1130] sm:$0xff]
      %v1132 = vmul.f32 %v1120, %v1109
      %v1133 = vadd.f32 %v1131, %v1132
      %v1134 = vtanh.pop %v1133
      %v1135 = vsub.f32 1.0, %v1129
      %v1136 = vmul.f32 %v1135, %v1134
      %v1137 = vmul.f32 %v1129, %v896
      %v1138 = vadd.f32 %v1136, %v1137
      %s1139 = scalar_lea.vmem [#allocation16], 24
      %1140 = vst.msk [vmem:[%s1139] sm:$0xff] %vm164, %v1138
      %v1142 = vsel %vm164, %v1138, 0
      %1144 = vmatprep.subr.mxu0 0.0
      %1145 = vmatpush1.msra.mxu0 %v142
      %1146 = vmatprep.subr.mxu0 0.0
      %1147 = vmatpush1.msra.mxu0 %v143
      %1148 = vmatprep.subr.mxu0 0.0
      %1149 = vmatpush1.msra.mxu0 %v144
      %1150 = vmatprep.subr.mxu0 0.0
      %1151 = vmatpush1.msra.mxu0 %v145
      %1152 = vmatprep.subr.mxu0 0.0
      %1153 = vmatpush1.msra.mxu0 0.0
      %1154 = vmatprep.subr.mxu0 0.0
      %1155 = vmatpush1.msra.mxu0 0.0
      %1156 = vmatprep.subr.mxu0 0.0
      %1157 = vmatpush1.msra.mxu0 0.0
      %1158 = vmatprep.subr.mxu0 0.0
      %1159 = vmatpush1.msra.mxu0 0.0
      %1160 = vmatprep.subr.mxu0 0.0
      %1161 = vmatpush1.msra.mxu0 0.0
      %1162 = vmatprep.subr.mxu0 0.0
      %1163 = vmatpush1.msra.mxu0 0.0
      %1164 = vmatprep.subr.mxu0 0.0
      %1165 = vmatpush1.msra.mxu0 0.0
      %1166 = vmatprep.subr.mxu0 0.0
      %1167 = vmatpush1.msra.mxu0 0.0
      %1168 = vmatprep.subr.mxu0 0.0
      %1169 = vmatpush1.msra.mxu0 0.0
      %1170 = vmatprep.subr.mxu0 0.0
      %1171 = vmatpush1.msra.mxu0 0.0
      %1172 = vmatprep.subr.mxu0 0.0
      %1173 = vmatpush1.msra.mxu0 0.0
      %1174 = vmatprep.subr.mxu0 0.0
      %1175 = vmatpush1.msra.mxu0 0.0
      %1176 = vmatprep.subr.mxu0 0.0
      %1177 = vmatpush1.msra.mxu0 0.0
      %1178 = vmatprep.subr.mxu0 0.0
      %1179 = vmatpush1.msra.mxu0 0.0
      %1180 = vmatprep.subr.mxu0 0.0
      %1181 = vmatpush1.msra.mxu0 0.0
      %1182 = vmatprep.subr.mxu0 0.0
      %1183 = vmatpush1.msra.mxu0 0.0
      %1184 = vmatprep.subr.mxu0 0.0
      %1185 = vmatpush1.msra.mxu0 0.0
      %1186 = vmatprep.subr.mxu0 0.0
      %1187 = vmatpush1.msra.mxu0 0.0
      %1188 = vmatprep.subr.mxu0 0.0
      %1189 = vmatpush1.msra.mxu0 0.0
      %1190 = vmatprep.subr.mxu0 0.0
      %1191 = vmatpush1.msra.mxu0 0.0
      %1192 = vmatprep.subr.mxu0 0.0
      %1193 = vmatpush1.msra.mxu0 0.0
      %1194 = vmatprep.subr.mxu0 0.0
      %1195 = vmatpush1.msra.mxu0 0.0
      %1196 = vmatprep.subr.mxu0 0.0
      %1197 = vmatpush1.msra.mxu0 0.0
      %1198 = vmatprep.subr.mxu0 0.0
      %1199 = vmatpush1.msra.mxu0 0.0
      %1200 = vmatprep.subr.mxu0 0.0
      %1201 = vmatpush1.msra.mxu0 0.0
      %1202 = vmatprep.subr.mxu0 0.0
      %1203 = vmatpush1.msra.mxu0 0.0
      %1204 = vmatprep.subr.mxu0 0.0
      %1205 = vmatpush1.msra.mxu0 0.0
      %1206 = vmatprep.subr.mxu0 0.0
      %1207 = vmatpush1.msra.mxu0 0.0
      %1208 = vmatprep.mubr.f32.mxu0 0.0
      %1209 = vmatmul.mubr.f32.gmra.mrb[0].mxu0 %v1142
      %v1210 = vpop.f32.mrb[0].mxu0
      %v1211 = vadd.f32 %v162, %v1210
      %v1212 = vpop.f32.mrb[0].mxu0
      %1213 = vdwg.mxu0
      %1214 = vmatprep.subr.mxu0 0.0
      %1215 = vmatpush1.msra.mxu0 %v146
      %1216 = vmatprep.subr.mxu0 0.0
      %1217 = vmatpush1.msra.mxu0 %v147
      %1218 = vmatprep.subr.mxu0 0.0
      %1219 = vmatpush1.msra.mxu0 %v148
      %1220 = vmatprep.subr.mxu0 0.0
      %1221 = vmatpush1.msra.mxu0 %v149
      %1222 = vmatprep.subr.mxu0 0.0
      %1223 = vmatpush1.msra.mxu0 0.0
      %1224 = vmatprep.subr.mxu0 0.0
      %1225 = vmatpush1.msra.mxu0 0.0
      %1226 = vmatprep.subr.mxu0 0.0
      %1227 = vmatpush1.msra.mxu0 0.0
      %1228 = vmatprep.subr.mxu0 0.0
      %1229 = vmatpush1.msra.mxu0 0.0
      %1230 = vmatprep.subr.mxu0 0.0
      %1231 = vmatpush1.msra.mxu0 0.0
      %1232 = vmatprep.subr.mxu0 0.0
      %1233 = vmatpush1.msra.mxu0 0.0
      %1234 = vmatprep.subr.mxu0 0.0
      %1235 = vmatpush1.msra.mxu0 0.0
      %1236 = vmatprep.subr.mxu0 0.0
      %1237 = vmatpush1.msra.mxu0 0.0
      %1238 = vmatprep.subr.mxu0 0.0
      %1239 = vmatpush1.msra.mxu0 0.0
      %1240 = vmatprep.subr.mxu0 0.0
      %1241 = vmatpush1.msra.mxu0 0.0
      %1242 = vmatprep.subr.mxu0 0.0
      %1243 = vmatpush1.msra.mxu0 0.0
      %1244 = vmatprep.subr.mxu0 0.0
      %1245 = vmatpush1.msra.mxu0 0.0
      %1246 = vmatprep.subr.mxu0 0.0
      %1247 = vmatpush1.msra.mxu0 0.0
      %1248 = vmatprep.subr.mxu0 0.0
      %1249 = vmatpush1.msra.mxu0 0.0
      %1250 = vmatprep.subr.mxu0 0.0
      %1251 = vmatpush1.msra.mxu0 0.0
      %1252 = vmatprep.subr.mxu0 0.0
      %1253 = vmatpush1.msra.mxu0 0.0
      %1254 = vmatprep.subr.mxu0 0.0
      %1255 = vmatpush1.msra.mxu0 0.0
      %1256 = vmatprep.subr.mxu0 0.0
      %1257 = vmatpush1.msra.mxu0 0.0
      %1258 = vmatprep.subr.mxu0 0.0
      %1259 = vmatpush1.msra.mxu0 0.0
      %1260 = vmatprep.subr.mxu0 0.0
      %1261 = vmatpush1.msra.mxu0 0.0
      %1262 = vmatprep.subr.mxu0 0.0
      %1263 = vmatpush1.msra.mxu0 0.0
      %1264 = vmatprep.subr.mxu0 0.0
      %1265 = vmatpush1.msra.mxu0 0.0
      %1266 = vmatprep.subr.mxu0 0.0
      %1267 = vmatpush1.msra.mxu0 0.0
      %1268 = vmatprep.subr.mxu0 0.0
      %1269 = vmatpush1.msra.mxu0 0.0
      %1270 = vmatprep.subr.mxu0 0.0
      %1271 = vmatpush1.msra.mxu0 0.0
      %1272 = vmatprep.subr.mxu0 0.0
      %1273 = vmatpush1.msra.mxu0 0.0
      %1274 = vmatprep.subr.mxu0 0.0
      %1275 = vmatpush1.msra.mxu0 0.0
      %1276 = vmatprep.subr.mxu0 0.0
      %1277 = vmatpush1.msra.mxu0 0.0
      %1278 = vmatprep.mubr.f32.mxu0 0.0
      %1279 = vmatmul.mubr.f32.gmra.mrb[0].mxu0 %v1142
      %v1280 = vpop.f32.mrb[0].mxu0
      %v1281 = vadd.f32 %v242, %v1280
      %v1282 = vpop.f32.mrb[0].mxu0
      %1283 = vdwg.mxu0
      %1284 = vmatprep.subr.mxu0 0.0
      %1285 = vmatpush1.msra.mxu0 %v150
      %1286 = vmatprep.subr.mxu0 0.0
      %1287 = vmatpush1.msra.mxu0 %v151
      %1288 = vmatprep.subr.mxu0 0.0
      %1289 = vmatpush1.msra.mxu0 %v152
      %1290 = vmatprep.subr.mxu0 0.0
      %1291 = vmatpush1.msra.mxu0 %v153
      %1292 = vmatprep.subr.mxu0 0.0
      %1293 = vmatpush1.msra.mxu0 0.0
      %1294 = vmatprep.subr.mxu0 0.0
      %1295 = vmatpush1.msra.mxu0 0.0
      %1296 = vmatprep.subr.mxu0 0.0
      %1297 = vmatpush1.msra.mxu0 0.0
      %1298 = vmatprep.subr.mxu0 0.0
      %1299 = vmatpush1.msra.mxu0 0.0
      %1300 = vmatprep.subr.mxu0 0.0
      %1301 = vmatpush1.msra.mxu0 0.0
      %1302 = vmatprep.subr.mxu0 0.0
      %1303 = vmatpush1.msra.mxu0 0.0
      %1304 = vmatprep.subr.mxu0 0.0
      %1305 = vmatpush1.msra.mxu0 0.0
      %1306 = vmatprep.subr.mxu0 0.0
      %1307 = vmatpush1.msra.mxu0 0.0
      %1308 = vmatprep.subr.mxu0 0.0
      %1309 = vmatpush1.msra.mxu0 0.0
      %1310 = vmatprep.subr.mxu0 0.0
      %1311 = vmatpush1.msra.mxu0 0.0
      %1312 = vmatprep.subr.mxu0 0.0
      %1313 = vmatpush1.msra.mxu0 0.0
      %1314 = vmatprep.subr.mxu0 0.0
      %1315 = vmatpush1.msra.mxu0 0.0
      %1316 = vmatprep.subr.mxu0 0.0
      %1317 = vmatpush1.msra.mxu0 0.0
      %1318 = vmatprep.subr.mxu0 0.0
      %1319 = vmatpush1.msra.mxu0 0.0
      %1320 = vmatprep.subr.mxu0 0.0
      %1321 = vmatpush1.msra.mxu0 0.0
      %1322 = vmatprep.subr.mxu0 0.0
      %1323 = vmatpush1.msra.mxu0 0.0
      %1324 = vmatprep.subr.mxu0 0.0
      %1325 = vmatpush1.msra.mxu0 0.0
      %1326 = vmatprep.subr.mxu0 0.0
      %1327 = vmatpush1.msra.mxu0 0.0
      %1328 = vmatprep.subr.mxu0 0.0
      %1329 = vmatpush1.msra.mxu0 0.0
      %1330 = vmatprep.subr.mxu0 0.0
      %1331 = vmatpush1.msra.mxu0 0.0
      %1332 = vmatprep.subr.mxu0 0.0
      %1333 = vmatpush1.msra.mxu0 0.0
      %1334 = vmatprep.subr.mxu0 0.0
      %1335 = vmatpush1.msra.mxu0 0.0
      %1336 = vmatprep.subr.mxu0 0.0
      %1337 = vmatpush1.msra.mxu0 0.0
      %1338 = vmatprep.subr.mxu0 0.0
      %1339 = vmatpush1.msra.mxu0 0.0
      %1340 = vmatprep.subr.mxu0 0.0
      %1341 = vmatpush1.msra.mxu0 0.0
      %1342 = vmatprep.subr.mxu0 0.0
      %1343 = vmatpush1.msra.mxu0 0.0
      %1344 = vmatprep.subr.mxu0 0.0
      %1345 = vmatpush1.msra.mxu0 0.0
      %1346 = vmatprep.subr.mxu0 0.0
      %1347 = vmatpush1.msra.mxu0 0.0
      %1348 = vmatprep.mubr.f32.mxu0 0.0
      %1349 = vmatmul.mubr.f32.gmra.mrb[0].mxu0 %v1142
      %v1350 = vpop.f32.mrb[0].mxu0
      %v1351 = vadd.f32 %v318, %v1350
      %v1352 = vpop.f32.mrb[0].mxu0
      %1353 = vdwg.mxu0
      %s1354 = scalar_lea.vmem [#allocation5], 32
      %v1355 = vld [vmem:[%s1354] sm:$0xff]
      %v1356 = vadd.f32 %v1355, %v1211
      %v1357 = vxor.u32 %v1356, 2147483648
      %v1358 = vmul.f32 %v1357, 1.442695
      %v1359 = vpow.pop %v1358
      %v1360 = vadd.f32 %v1359, 1.0
      %v1361 = vrcp.pop %v1360
      %v1362 = vmul.f32 1.0, %v1361
      %s1363 = scalar_lea.vmem [#allocation8], 32
      %v1364 = vld [vmem:[%s1363] sm:$0xff]
      %v1365 = vadd.f32 %v1364, %v1281
      %v1366 = vxor.u32 %v1365, 2147483648
      %v1367 = vmul.f32 %v1366, 1.442695
      %v1368 = vpow.pop %v1367
      %v1369 = vadd.f32 %v1368, 1.0
      %v1370 = vrcp.pop %v1369
      %v1371 = vmul.f32 1.0, %v1370
      %s1372 = scalar_lea.vmem [#allocation10], 32
      %v1373 = vld [vmem:[%s1372] sm:$0xff]
      %v1374 = vmul.f32 %v1362, %v1351
      %v1375 = vadd.f32 %v1373, %v1374
      %v1376 = vtanh.pop %v1375
      %v1377 = vsub.f32 1.0, %v1371
      %v1378 = vmul.f32 %v1377, %v1376
      %v1379 = vmul.f32 %v1371, %v1138
      %v1380 = vadd.f32 %v1378, %v1379
      %s1381 = scalar_lea.vmem [#allocation16], 32
      %1382 = vst.msk [vmem:[%s1381] sm:$0xff] %vm164, %v1380
      %v1384 = vsel %vm164, %v1380, 0
      %1386 = vmatprep.subr.mxu0 0.0
      %1387 = vmatpush1.msra.mxu0 %v142
      %1388 = vmatprep.subr.mxu0 0.0
      %1389 = vmatpush1.msra.mxu0 %v143
      %1390 = vmatprep.subr.mxu0 0.0
      %1391 = vmatpush1.msra.mxu0 %v144
      %1392 = vmatprep.subr.mxu0 0.0
      %1393 = vmatpush1.msra.mxu0 %v145
      %1394 = vmatprep.subr.mxu0 0.0
      %1395 = vmatpush1.msra.mxu0 0.0
      %1396 = vmatprep.subr.mxu0 0.0
      %1397 = vmatpush1.msra.mxu0 0.0
      %1398 = vmatprep.subr.mxu0 0.0
      %1399 = vmatpush1.msra.mxu0 0.0
      %1400 = vmatprep.subr.mxu0 0.0
      %1401 = vmatpush1.msra.mxu0 0.0
      %1402 = vmatprep.subr.mxu0 0.0
      %1403 = vmatpush1.msra.mxu0 0.0
      %1404 = vmatprep.subr.mxu0 0.0
      %1405 = vmatpush1.msra.mxu0 0.0
      %1406 = vmatprep.subr.mxu0 0.0
      %1407 = vmatpush1.msra.mxu0 0.0
      %1408 = vmatprep.subr.mxu0 0.0
      %1409 = vmatpush1.msra.mxu0 0.0
      %1410 = vmatprep.subr.mxu0 0.0
      %1411 = vmatpush1.msra.mxu0 0.0
      %1412 = vmatprep.subr.mxu0 0.0
      %1413 = vmatpush1.msra.mxu0 0.0
      %1414 = vmatprep.subr.mxu0 0.0
      %1415 = vmatpush1.msra.mxu0 0.0
      %1416 = vmatprep.subr.mxu0 0.0
      %1417 = vmatpush1.msra.mxu0 0.0
      %1418 = vmatprep.subr.mxu0 0.0
      %1419 = vmatpush1.msra.mxu0 0.0
      %1420 = vmatprep.subr.mxu0 0.0
      %1421 = vmatpush1.msra.mxu0 0.0
      %1422 = vmatprep.subr.mxu0 0.0
      %1423 = vmatpush1.msra.mxu0 0.0
      %1424 = vmatprep.subr.mxu0 0.0
      %1425 = vmatpush1.msra.mxu0 0.0
      %1426 = vmatprep.subr.mxu0 0.0
      %1427 = vmatpush1.msra.mxu0 0.0
      %1428 = vmatprep.subr.mxu0 0.0
      %1429 = vmatpush1.msra.mxu0 0.0
      %1430 = vmatprep.subr.mxu0 0.0
      %1431 = vmatpush1.msra.mxu0 0.0
      %1432 = vmatprep.subr.mxu0 0.0
      %1433 = vmatpush1.msra.mxu0 0.0
      %1434 = vmatprep.subr.mxu0 0.0
      %1435 = vmatpush1.msra.mxu0 0.0
      %1436 = vmatprep.subr.mxu0 0.0
      %1437 = vmatpush1.msra.mxu0 0.0
      %1438 = vmatprep.subr.mxu0 0.0
      %1439 = vmatpush1.msra.mxu0 0.0
      %1440 = vmatprep.subr.mxu0 0.0
      %1441 = vmatpush1.msra.mxu0 0.0
      %1442 = vmatprep.subr.mxu0 0.0
      %1443 = vmatpush1.msra.mxu0 0.0
      %1444 = vmatprep.subr.mxu0 0.0
      %1445 = vmatpush1.msra.mxu0 0.0
      %1446 = vmatprep.subr.mxu0 0.0
      %1447 = vmatpush1.msra.mxu0 0.0
      %1448 = vmatprep.subr.mxu0 0.0
      %1449 = vmatpush1.msra.mxu0 0.0
      %1450 = vmatprep.mubr.f32.mxu0 0.0
      %1451 = vmatmul.mubr.f32.gmra.mrb[0].mxu0 %v1384
      %v1452 = vpop.f32.mrb[0].mxu0
      %v1453 = vadd.f32 %v162, %v1452
      %v1454 = vpop.f32.mrb[0].mxu0
      %1455 = vdwg.mxu0
      %1456 = vmatprep.subr.mxu0 0.0
      %1457 = vmatpush1.msra.mxu0 %v146
      %1458 = vmatprep.subr.mxu0 0.0
      %1459 = vmatpush1.msra.mxu0 %v147
      %1460 = vmatprep.subr.mxu0 0.0
      %1461 = vmatpush1.msra.mxu0 %v148
      %1462 = vmatprep.subr.mxu0 0.0
      %1463 = vmatpush1.msra.mxu0 %v149
      %1464 = vmatprep.subr.mxu0 0.0
      %1465 = vmatpush1.msra.mxu0 0.0
      %1466 = vmatprep.subr.mxu0 0.0
      %1467 = vmatpush1.msra.mxu0 0.0
      %1468 = vmatprep.subr.mxu0 0.0
      %1469 = vmatpush1.msra.mxu0 0.0
      %1470 = vmatprep.subr.mxu0 0.0
      %1471 = vmatpush1.msra.mxu0 0.0
      %1472 = vmatprep.subr.mxu0 0.0
      %1473 = vmatpush1.msra.mxu0 0.0
      %1474 = vmatprep.subr.mxu0 0.0
      %1475 = vmatpush1.msra.mxu0 0.0
      %1476 = vmatprep.subr.mxu0 0.0
      %1477 = vmatpush1.msra.mxu0 0.0
      %1478 = vmatprep.subr.mxu0 0.0
      %1479 = vmatpush1.msra.mxu0 0.0
      %1480 = vmatprep.subr.mxu0 0.0
      %1481 = vmatpush1.msra.mxu0 0.0
      %1482 = vmatprep.subr.mxu0 0.0
      %1483 = vmatpush1.msra.mxu0 0.0
      %1484 = vmatprep.subr.mxu0 0.0
      %1485 = vmatpush1.msra.mxu0 0.0
      %1486 = vmatprep.subr.mxu0 0.0
      %1487 = vmatpush1.msra.mxu0 0.0
      %1488 = vmatprep.subr.mxu0 0.0
      %1489 = vmatpush1.msra.mxu0 0.0
      %1490 = vmatprep.subr.mxu0 0.0
      %1491 = vmatpush1.msra.mxu0 0.0
      %1492 = vmatprep.subr.mxu0 0.0
      %1493 = vmatpush1.msra.mxu0 0.0
      %1494 = vmatprep.subr.mxu0 0.0
      %1495 = vmatpush1.msra.mxu0 0.0
      %1496 = vmatprep.subr.mxu0 0.0
      %1497 = vmatpush1.msra.mxu0 0.0
      %1498 = vmatprep.subr.mxu0 0.0
      %1499 = vmatpush1.msra.mxu0 0.0
      %1500 = vmatprep.subr.mxu0 0.0
      %1501 = vmatpush1.msra.mxu0 0.0
      %1502 = vmatprep.subr.mxu0 0.0
      %1503 = vmatpush1.msra.mxu0 0.0
      %1504 = vmatprep.subr.mxu0 0.0
      %1505 = vmatpush1.msra.mxu0 0.0
      %1506 = vmatprep.subr.mxu0 0.0
      %1507 = vmatpush1.msra.mxu0 0.0
      %1508 = vmatprep.subr.mxu0 0.0
      %1509 = vmatpush1.msra.mxu0 0.0
      %1510 = vmatprep.subr.mxu0 0.0
      %1511 = vmatpush1.msra.mxu0 0.0
      %1512 = vmatprep.subr.mxu0 0.0
      %1513 = vmatpush1.msra.mxu0 0.0
      %1514 = vmatprep.subr.mxu0 0.0
      %1515 = vmatpush1.msra.mxu0 0.0
      %1516 = vmatprep.subr.mxu0 0.0
      %1517 = vmatpush1.msra.mxu0 0.0
      %1518 = vmatprep.subr.mxu0 0.0
      %1519 = vmatpush1.msra.mxu0 0.0
      %1520 = vmatprep.mubr.f32.mxu0 0.0
      %1521 = vmatmul.mubr.f32.gmra.mrb[0].mxu0 %v1384
      %v1522 = vpop.f32.mrb[0].mxu0
      %v1523 = vadd.f32 %v242, %v1522
      %v1524 = vpop.f32.mrb[0].mxu0
      %1525 = vdwg.mxu0
      %1526 = vmatprep.subr.mxu0 0.0
      %1527 = vmatpush1.msra.mxu0 %v150
      %1528 = vmatprep.subr.mxu0 0.0
      %1529 = vmatpush1.msra.mxu0 %v151
      %1530 = vmatprep.subr.mxu0 0.0
      %1531 = vmatpush1.msra.mxu0 %v152
      %1532 = vmatprep.subr.mxu0 0.0
      %1533 = vmatpush1.msra.mxu0 %v153
      %1534 = vmatprep.subr.mxu0 0.0
      %1535 = vmatpush1.msra.mxu0 0.0
      %1536 = vmatprep.subr.mxu0 0.0
      %1537 = vmatpush1.msra.mxu0 0.0
      %1538 = vmatprep.subr.mxu0 0.0
      %1539 = vmatpush1.msra.mxu0 0.0
      %1540 = vmatprep.subr.mxu0 0.0
      %1541 = vmatpush1.msra.mxu0 0.0
      %1542 = vmatprep.subr.mxu0 0.0
      %1543 = vmatpush1.msra.mxu0 0.0
      %1544 = vmatprep.subr.mxu0 0.0
      %1545 = vmatpush1.msra.mxu0 0.0
      %1546 = vmatprep.subr.mxu0 0.0
      %1547 = vmatpush1.msra.mxu0 0.0
      %1548 = vmatprep.subr.mxu0 0.0
      %1549 = vmatpush1.msra.mxu0 0.0
      %1550 = vmatprep.subr.mxu0 0.0
      %1551 = vmatpush1.msra.mxu0 0.0
      %1552 = vmatprep.subr.mxu0 0.0
      %1553 = vmatpush1.msra.mxu0 0.0
      %1554 = vmatprep.subr.mxu0 0.0
      %1555 = vmatpush1.msra.mxu0 0.0
      %1556 = vmatprep.subr.mxu0 0.0
      %1557 = vmatpush1.msra.mxu0 0.0
      %1558 = vmatprep.subr.mxu0 0.0
      %1559 = vmatpush1.msra.mxu0 0.0
      %1560 = vmatprep.subr.mxu0 0.0
      %1561 = vmatpush1.msra.mxu0 0.0
      %1562 = vmatprep.subr.mxu0 0.0
      %1563 = vmatpush1.msra.mxu0 0.0
      %1564 = vmatprep.subr.mxu0 0.0
      %1565 = vmatpush1.msra.mxu0 0.0
      %1566 = vmatprep.subr.mxu0 0.0
      %1567 = vmatpush1.msra.mxu0 0.0
      %1568 = vmatprep.subr.mxu0 0.0
      %1569 = vmatpush1.msra.mxu0 0.0
      %1570 = vmatprep.subr.mxu0 0.0
      %1571 = vmatpush1.msra.mxu0 0.0
      %1572 = vmatprep.subr.mxu0 0.0
      %1573 = vmatpush1.msra.mxu0 0.0
      %1574 = vmatprep.subr.mxu0 0.0
      %1575 = vmatpush1.msra.mxu0 0.0
      %1576 = vmatprep.subr.mxu0 0.0
      %1577 = vmatpush1.msra.mxu0 0.0
      %1578 = vmatprep.subr.mxu0 0.0
      %1579 = vmatpush1.msra.mxu0 0.0
      %1580 = vmatprep.subr.mxu0 0.0
      %1581 = vmatpush1.msra.mxu0 0.0
      %1582 = vmatprep.subr.mxu0 0.0
      %1583 = vmatpush1.msra.mxu0 0.0
      %1584 = vmatprep.subr.mxu0 0.0
      %1585 = vmatpush1.msra.mxu0 0.0
      %1586 = vmatprep.subr.mxu0 0.0
      %1587 = vmatpush1.msra.mxu0 0.0
      %1588 = vmatprep.subr.mxu0 0.0
      %1589 = vmatpush1.msra.mxu0 0.0
      %1590 = vmatprep.mubr.f32.mxu0 0.0
      %1591 = vmatmul.mubr.f32.gmra.mrb[0].mxu0 %v1384
      %v1592 = vpop.f32.mrb[0].mxu0
      %v1593 = vadd.f32 %v318, %v1592
      %v1594 = vpop.f32.mrb[0].mxu0
      %1595 = vdwg.mxu0
      %s1596 = scalar_lea.vmem [#allocation5], 40
      %v1597 = vld [vmem:[%s1596] sm:$0xff]
      %v1598 = vadd.f32 %v1597, %v1453
      %v1599 = vxor.u32 %v1598, 2147483648
      %v1600 = vmul.f32 %v1599, 1.442695
      %v1601 = vpow.pop %v1600
      %v1602 = vadd.f32 %v1601, 1.0
      %v1603 = vrcp.pop %v1602
      %v1604 = vmul.f32 1.0, %v1603
      %s1605 = scalar_lea.vmem [#allocation8], 40
      %v1606 = vld [vmem:[%s1605] sm:$0xff]
      %v1607 = vadd.f32 %v1606, %v1523
      %v1608 = vxor.u32 %v1607, 2147483648
      %v1609 = vmul.f32 %v1608, 1.442695
      %v1610 = vpow.pop %v1609
      %v1611 = vadd.f32 %v1610, 1.0
      %v1612 = vrcp.pop %v1611
      %v1613 = vmul.f32 1.0, %v1612
      %s1614 = scalar_lea.vmem [#allocation10], 40
      %v1615 = vld [vmem:[%s1614] sm:$0xff]
      %v1616 = vmul.f32 %v1604, %v1593
      %v1617 = vadd.f32 %v1615, %v1616
      %v1618 = vtanh.pop %v1617
      %v1619 = vsub.f32 1.0, %v1613
      %v1620 = vmul.f32 %v1619, %v1618
      %v1621 = vmul.f32 %v1613, %v1380
      %v1622 = vadd.f32 %v1620, %v1621
      %s1623 = scalar_lea.vmem [#allocation16], 40
      %1624 = vst.msk [vmem:[%s1623] sm:$0xff] %vm164, %v1622
      %v1626 = vsel %vm164, %v1622, 0
      %1628 = vmatprep.subr.mxu0 0.0
      %1629 = vmatpush1.msra.mxu0 %v142
      %1630 = vmatprep.subr.mxu0 0.0
      %1631 = vmatpush1.msra.mxu0 %v143
      %1632 = vmatprep.subr.mxu0 0.0
      %1633 = vmatpush1.msra.mxu0 %v144
      %1634 = vmatprep.subr.mxu0 0.0
      %1635 = vmatpush1.msra.mxu0 %v145
      %1636 = vmatprep.subr.mxu0 0.0
      %1637 = vmatpush1.msra.mxu0 0.0
      %1638 = vmatprep.subr.mxu0 0.0
      %1639 = vmatpush1.msra.mxu0 0.0
      %1640 = vmatprep.subr.mxu0 0.0
      %1641 = vmatpush1.msra.mxu0 0.0
      %1642 = vmatprep.subr.mxu0 0.0
      %1643 = vmatpush1.msra.mxu0 0.0
      %1644 = vmatprep.subr.mxu0 0.0
      %1645 = vmatpush1.msra.mxu0 0.0
      %1646 = vmatprep.subr.mxu0 0.0
      %1647 = vmatpush1.msra.mxu0 0.0
      %1648 = vmatprep.subr.mxu0 0.0
      %1649 = vmatpush1.msra.mxu0 0.0
      %1650 = vmatprep.subr.mxu0 0.0
      %1651 = vmatpush1.msra.mxu0 0.0
      %1652 = vmatprep.subr.mxu0 0.0
      %1653 = vmatpush1.msra.mxu0 0.0
      %1654 = vmatprep.subr.mxu0 0.0
      %1655 = vmatpush1.msra.mxu0 0.0
      %1656 = vmatprep.subr.mxu0 0.0
      %1657 = vmatpush1.msra.mxu0 0.0
      %1658 = vmatprep.subr.mxu0 0.0
      %1659 = vmatpush1.msra.mxu0 0.0
      %1660 = vmatprep.subr.mxu0 0.0
      %1661 = vmatpush1.msra.mxu0 0.0
      %1662 = vmatprep.subr.mxu0 0.0
      %1663 = vmatpush1.msra.mxu0 0.0
      %1664 = vmatprep.subr.mxu0 0.0
      %1665 = vmatpush1.msra.mxu0 0.0
      %1666 = vmatprep.subr.mxu0 0.0
      %1667 = vmatpush1.msra.mxu0 0.0
      %1668 = vmatprep.subr.mxu0 0.0
      %1669 = vmatpush1.msra.mxu0 0.0
      %1670 = vmatprep.subr.mxu0 0.0
      %1671 = vmatpush1.msra.mxu0 0.0
      %1672 = vmatprep.subr.mxu0 0.0
      %1673 = vmatpush1.msra.mxu0 0.0
      %1674 = vmatprep.subr.mxu0 0.0
      %1675 = vmatpush1.msra.mxu0 0.0
      %1676 = vmatprep.subr.mxu0 0.0
      %1677 = vmatpush1.msra.mxu0 0.0
      %1678 = vmatprep.subr.mxu0 0.0
      %1679 = vmatpush1.msra.mxu0 0.0
      %1680 = vmatprep.subr.mxu0 0.0
      %1681 = vmatpush1.msra.mxu0 0.0
      %1682 = vmatprep.subr.mxu0 0.0
      %1683 = vmatpush1.msra.mxu0 0.0
      %1684 = vmatprep.subr.mxu0 0.0
      %1685 = vmatpush1.msra.mxu0 0.0
      %1686 = vmatprep.subr.mxu0 0.0
      %1687 = vmatpush1.msra.mxu0 0.0
      %1688 = vmatprep.subr.mxu0 0.0
      %1689 = vmatpush1.msra.mxu0 0.0
      %1690 = vmatprep.subr.mxu0 0.0
      %1691 = vmatpush1.msra.mxu0 0.0
      %1692 = vmatprep.mubr.f32.mxu0 0.0
      %1693 = vmatmul.mubr.f32.gmra.mrb[0].mxu0 %v1626
      %v1694 = vpop.f32.mrb[0].mxu0
      %v1695 = vadd.f32 %v162, %v1694
      %v1696 = vpop.f32.mrb[0].mxu0
      %1697 = vdwg.mxu0
      %1698 = vmatprep.subr.mxu0 0.0
      %1699 = vmatpush1.msra.mxu0 %v146
      %1700 = vmatprep.subr.mxu0 0.0
      %1701 = vmatpush1.msra.mxu0 %v147
      %1702 = vmatprep.subr.mxu0 0.0
      %1703 = vmatpush1.msra.mxu0 %v148
      %1704 = vmatprep.subr.mxu0 0.0
      %1705 = vmatpush1.msra.mxu0 %v149
      %1706 = vmatprep.subr.mxu0 0.0
      %1707 = vmatpush1.msra.mxu0 0.0
      %1708 = vmatprep.subr.mxu0 0.0
      %1709 = vmatpush1.msra.mxu0 0.0
      %1710 = vmatprep.subr.mxu0 0.0
      %1711 = vmatpush1.msra.mxu0 0.0
      %1712 = vmatprep.subr.mxu0 0.0
      %1713 = vmatpush1.msra.mxu0 0.0
      %1714 = vmatprep.subr.mxu0 0.0
      %1715 = vmatpush1.msra.mxu0 0.0
      %1716 = vmatprep.subr.mxu0 0.0
      %1717 = vmatpush1.msra.mxu0 0.0
      %1718 = vmatprep.subr.mxu0 0.0
      %1719 = vmatpush1.msra.mxu0 0.0
      %1720 = vmatprep.subr.mxu0 0.0
      %1721 = vmatpush1.msra.mxu0 0.0
      %1722 = vmatprep.subr.mxu0 0.0
      %1723 = vmatpush1.msra.mxu0 0.0
      %1724 = vmatprep.subr.mxu0 0.0
      %1725 = vmatpush1.msra.mxu0 0.0
      %1726 = vmatprep.subr.mxu0 0.0
      %1727 = vmatpush1.msra.mxu0 0.0
      %1728 = vmatprep.subr.mxu0 0.0
      %1729 = vmatpush1.msra.mxu0 0.0
      %1730 = vmatprep.subr.mxu0 0.0
      %1731 = vmatpush1.msra.mxu0 0.0
      %1732 = vmatprep.subr.mxu0 0.0
      %1733 = vmatpush1.msra.mxu0 0.0
      %1734 = vmatprep.subr.mxu0 0.0
      %1735 = vmatpush1.msra.mxu0 0.0
      %1736 = vmatprep.subr.mxu0 0.0
      %1737 = vmatpush1.msra.mxu0 0.0
      %1738 = vmatprep.subr.mxu0 0.0
      %1739 = vmatpush1.msra.mxu0 0.0
      %1740 = vmatprep.subr.mxu0 0.0
      %1741 = vmatpush1.msra.mxu0 0.0
      %1742 = vmatprep.subr.mxu0 0.0
      %1743 = vmatpush1.msra.mxu0 0.0
      %1744 = vmatprep.subr.mxu0 0.0
      %1745 = vmatpush1.msra.mxu0 0.0
      %1746 = vmatprep.subr.mxu0 0.0
      %1747 = vmatpush1.msra.mxu0 0.0
      %1748 = vmatprep.subr.mxu0 0.0
      %1749 = vmatpush1.msra.mxu0 0.0
      %1750 = vmatprep.subr.mxu0 0.0
      %1751 = vmatpush1.msra.mxu0 0.0
      %1752 = vmatprep.subr.mxu0 0.0
      %1753 = vmatpush1.msra.mxu0 0.0
      %1754 = vmatprep.subr.mxu0 0.0
      %1755 = vmatpush1.msra.mxu0 0.0
      %1756 = vmatprep.subr.mxu0 0.0
      %1757 = vmatpush1.msra.mxu0 0.0
      %1758 = vmatprep.subr.mxu0 0.0
      %1759 = vmatpush1.msra.mxu0 0.0
      %1760 = vmatprep.subr.mxu0 0.0
      %1761 = vmatpush1.msra.mxu0 0.0
      %1762 = vmatprep.mubr.f32.mxu0 0.0
      %1763 = vmatmul.mubr.f32.gmra.mrb[0].mxu0 %v1626
      %v1764 = vpop.f32.mrb[0].mxu0
      %v1765 = vadd.f32 %v242, %v1764
      %v1766 = vpop.f32.mrb[0].mxu0
      %1767 = vdwg.mxu0
      %1768 = vmatprep.subr.mxu0 0.0
      %1769 = vmatpush1.msra.mxu0 %v150
      %1770 = vmatprep.subr.mxu0 0.0
      %1771 = vmatpush1.msra.mxu0 %v151
      %1772 = vmatprep.subr.mxu0 0.0
      %1773 = vmatpush1.msra.mxu0 %v152
      %1774 = vmatprep.subr.mxu0 0.0
      %1775 = vmatpush1.msra.mxu0 %v153
      %1776 = vmatprep.subr.mxu0 0.0
      %1777 = vmatpush1.msra.mxu0 0.0
      %1778 = vmatprep.subr.mxu0 0.0
      %1779 = vmatpush1.msra.mxu0 0.0
      %1780 = vmatprep.subr.mxu0 0.0
      %1781 = vmatpush1.msra.mxu0 0.0
      %1782 = vmatprep.subr.mxu0 0.0
      %1783 = vmatpush1.msra.mxu0 0.0
      %1784 = vmatprep.subr.mxu0 0.0
      %1785 = vmatpush1.msra.mxu0 0.0
      %1786 = vmatprep.subr.mxu0 0.0
      %1787 = vmatpush1.msra.mxu0 0.0
      %1788 = vmatprep.subr.mxu0 0.0
      %1789 = vmatpush1.msra.mxu0 0.0
      %1790 = vmatprep.subr.mxu0 0.0
      %1791 = vmatpush1.msra.mxu0 0.0
      %1792 = vmatprep.subr.mxu0 0.0
      %1793 = vmatpush1.msra.mxu0 0.0
      %1794 = vmatprep.subr.mxu0 0.0
      %1795 = vmatpush1.msra.mxu0 0.0
      %1796 = vmatprep.subr.mxu0 0.0
      %1797 = vmatpush1.msra.mxu0 0.0
      %1798 = vmatprep.subr.mxu0 0.0
      %1799 = vmatpush1.msra.mxu0 0.0
      %1800 = vmatprep.subr.mxu0 0.0
      %1801 = vmatpush1.msra.mxu0 0.0
      %1802 = vmatprep.subr.mxu0 0.0
      %1803 = vmatpush1.msra.mxu0 0.0
      %1804 = vmatprep.subr.mxu0 0.0
      %1805 = vmatpush1.msra.mxu0 0.0
      %1806 = vmatprep.subr.mxu0 0.0
      %1807 = vmatpush1.msra.mxu0 0.0
      %1808 = vmatprep.subr.mxu0 0.0
      %1809 = vmatpush1.msra.mxu0 0.0
      %1810 = vmatprep.subr.mxu0 0.0
      %1811 = vmatpush1.msra.mxu0 0.0
      %1812 = vmatprep.subr.mxu0 0.0
      %1813 = vmatpush1.msra.mxu0 0.0
      %1814 = vmatprep.subr.mxu0 0.0
      %1815 = vmatpush1.msra.mxu0 0.0
      %1816 = vmatprep.subr.mxu0 0.0
      %1817 = vmatpush1.msra.mxu0 0.0
      %1818 = vmatprep.subr.mxu0 0.0
      %1819 = vmatpush1.msra.mxu0 0.0
      %1820 = vmatprep.subr.mxu0 0.0
      %1821 = vmatpush1.msra.mxu0 0.0
      %1822 = vmatprep.subr.mxu0 0.0
      %1823 = vmatpush1.msra.mxu0 0.0
      %1824 = vmatprep.subr.mxu0 0.0
      %1825 = vmatpush1.msra.mxu0 0.0
      %1826 = vmatprep.subr.mxu0 0.0
      %1827 = vmatpush1.msra.mxu0 0.0
      %1828 = vmatprep.subr.mxu0 0.0
      %1829 = vmatpush1.msra.mxu0 0.0
      %1830 = vmatprep.subr.mxu0 0.0
      %1831 = vmatpush1.msra.mxu0 0.0
      %1832 = vmatprep.mubr.f32.mxu0 0.0
      %1833 = vmatmul.mubr.f32.gmra.mrb[0].mxu0 %v1626
      %v1834 = vpop.f32.mrb[0].mxu0
      %v1835 = vadd.f32 %v318, %v1834
      %v1836 = vpop.f32.mrb[0].mxu0
      %1837 = vdwg.mxu0
      %s1838 = scalar_lea.vmem [#allocation5], 48
      %v1839 = vld [vmem:[%s1838] sm:$0xff]
      %v1840 = vadd.f32 %v1839, %v1695
      %v1841 = vxor.u32 %v1840, 2147483648
      %v1842 = vmul.f32 %v1841, 1.442695
      %v1843 = vpow.pop %v1842
      %v1844 = vadd.f32 %v1843, 1.0
      %v1845 = vrcp.pop %v1844
      %v1846 = vmul.f32 1.0, %v1845
      %s1847 = scalar_lea.vmem [#allocation8], 48
      %v1848 = vld [vmem:[%s1847] sm:$0xff]
      %v1849 = vadd.f32 %v1848, %v1765
      %v1850 = vxor.u32 %v1849, 2147483648
      %v1851 = vmul.f32 %v1850, 1.442695
      %v1852 = vpow.pop %v1851
      %v1853 = vadd.f32 %v1852, 1.0
      %v1854 = vrcp.pop %v1853
      %v1855 = vmul.f32 1.0, %v1854
      %s1856 = scalar_lea.vmem [#allocation10], 48
      %v1857 = vld [vmem:[%s1856] sm:$0xff]
      %v1858 = vmul.f32 %v1846, %v1835
      %v1859 = vadd.f32 %v1857, %v1858
      %v1860 = vtanh.pop %v1859
      %v1861 = vsub.f32 1.0, %v1855
      %v1862 = vmul.f32 %v1861, %v1860
      %v1863 = vmul.f32 %v1855, %v1622
      %v1864 = vadd.f32 %v1862, %v1863
      %s1865 = scalar_lea.vmem [#allocation16], 48
      %1866 = vst.msk [vmem:[%s1865] sm:$0xff] %vm164, %v1864
      %v1868 = vsel %vm164, %v1864, 0
      %1870 = vmatprep.subr.mxu0 0.0
      %1871 = vmatpush1.msra.mxu0 %v142
      %1872 = vmatprep.subr.mxu0 0.0
      %1873 = vmatpush1.msra.mxu0 %v143
      %1874 = vmatprep.subr.mxu0 0.0
      %1875 = vmatpush1.msra.mxu0 %v144
      %1876 = vmatprep.subr.mxu0 0.0
      %1877 = vmatpush1.msra.mxu0 %v145
      %1878 = vmatprep.subr.mxu0 0.0
      %1879 = vmatpush1.msra.mxu0 0.0
      %1880 = vmatprep.subr.mxu0 0.0
      %1881 = vmatpush1.msra.mxu0 0.0
      %1882 = vmatprep.subr.mxu0 0.0
      %1883 = vmatpush1.msra.mxu0 0.0
      %1884 = vmatprep.subr.mxu0 0.0
      %1885 = vmatpush1.msra.mxu0 0.0
      %1886 = vmatprep.subr.mxu0 0.0
      %1887 = vmatpush1.msra.mxu0 0.0
      %1888 = vmatprep.subr.mxu0 0.0
      %1889 = vmatpush1.msra.mxu0 0.0
      %1890 = vmatprep.subr.mxu0 0.0
      %1891 = vmatpush1.msra.mxu0 0.0
      %1892 = vmatprep.subr.mxu0 0.0
      %1893 = vmatpush1.msra.mxu0 0.0
      %1894 = vmatprep.subr.mxu0 0.0
      %1895 = vmatpush1.msra.mxu0 0.0
      %1896 = vmatprep.subr.mxu0 0.0
      %1897 = vmatpush1.msra.mxu0 0.0
      %1898 = vmatprep.subr.mxu0 0.0
      %1899 = vmatpush1.msra.mxu0 0.0
      %1900 = vmatprep.subr.mxu0 0.0
      %1901 = vmatpush1.msra.mxu0 0.0
      %1902 = vmatprep.subr.mxu0 0.0
      %1903 = vmatpush1.msra.mxu0 0.0
      %1904 = vmatprep.subr.mxu0 0.0
      %1905 = vmatpush1.msra.mxu0 0.0
      %1906 = vmatprep.subr.mxu0 0.0
      %1907 = vmatpush1.msra.mxu0 0.0
      %1908 = vmatprep.subr.mxu0 0.0
      %1909 = vmatpush1.msra.mxu0 0.0
      %1910 = vmatprep.subr.mxu0 0.0
      %1911 = vmatpush1.msra.mxu0 0.0
      %1912 = vmatprep.subr.mxu0 0.0
      %1913 = vmatpush1.msra.mxu0 0.0
      %1914 = vmatprep.subr.mxu0 0.0
      %1915 = vmatpush1.msra.mxu0 0.0
      %1916 = vmatprep.subr.mxu0 0.0
      %1917 = vmatpush1.msra.mxu0 0.0
      %1918 = vmatprep.subr.mxu0 0.0
      %1919 = vmatpush1.msra.mxu0 0.0
      %1920 = vmatprep.subr.mxu0 0.0
      %1921 = vmatpush1.msra.mxu0 0.0
      %1922 = vmatprep.subr.mxu0 0.0
      %1923 = vmatpush1.msra.mxu0 0.0
      %1924 = vmatprep.subr.mxu0 0.0
      %1925 = vmatpush1.msra.mxu0 0.0
      %1926 = vmatprep.subr.mxu0 0.0
      %1927 = vmatpush1.msra.mxu0 0.0
      %1928 = vmatprep.subr.mxu0 0.0
      %1929 = vmatpush1.msra.mxu0 0.0
      %1930 = vmatprep.subr.mxu0 0.0
      %1931 = vmatpush1.msra.mxu0 0.0
      %1932 = vmatprep.subr.mxu0 0.0
      %1933 = vmatpush1.msra.mxu0 0.0
      %1934 = vmatprep.mubr.f32.mxu0 0.0
      %1935 = vmatmul.mubr.f32.gmra.mrb[0].mxu0 %v1868
      %v1936 = vpop.f32.mrb[0].mxu0
      %v1937 = vadd.f32 %v162, %v1936
      %v1938 = vpop.f32.mrb[0].mxu0
      %1939 = vdwg.mxu0
      %1940 = vmatprep.subr.mxu0 0.0
      %1941 = vmatpush1.msra.mxu0 %v146
      %1942 = vmatprep.subr.mxu0 0.0
      %1943 = vmatpush1.msra.mxu0 %v147
      %1944 = vmatprep.subr.mxu0 0.0
      %1945 = vmatpush1.msra.mxu0 %v148
      %1946 = vmatprep.subr.mxu0 0.0
      %1947 = vmatpush1.msra.mxu0 %v149
      %1948 = vmatprep.subr.mxu0 0.0
      %1949 = vmatpush1.msra.mxu0 0.0
      %1950 = vmatprep.subr.mxu0 0.0
      %1951 = vmatpush1.msra.mxu0 0.0
      %1952 = vmatprep.subr.mxu0 0.0
      %1953 = vmatpush1.msra.mxu0 0.0
      %1954 = vmatprep.subr.mxu0 0.0
      %1955 = vmatpush1.msra.mxu0 0.0
      %1956 = vmatprep.subr.mxu0 0.0
      %1957 = vmatpush1.msra.mxu0 0.0
      %1958 = vmatprep.subr.mxu0 0.0
      %1959 = vmatpush1.msra.mxu0 0.0
      %1960 = vmatprep.subr.mxu0 0.0
      %1961 = vmatpush1.msra.mxu0 0.0
      %1962 = vmatprep.subr.mxu0 0.0
      %1963 = vmatpush1.msra.mxu0 0.0
      %1964 = vmatprep.subr.mxu0 0.0
      %1965 = vmatpush1.msra.mxu0 0.0
      %1966 = vmatprep.subr.mxu0 0.0
      %1967 = vmatpush1.msra.mxu0 0.0
      %1968 = vmatprep.subr.mxu0 0.0
      %1969 = vmatpush1.msra.mxu0 0.0
      %1970 = vmatprep.subr.mxu0 0.0
      %1971 = vmatpush1.msra.mxu0 0.0
      %1972 = vmatprep.subr.mxu0 0.0
      %1973 = vmatpush1.msra.mxu0 0.0
      %1974 = vmatprep.subr.mxu0 0.0
      %1975 = vmatpush1.msra.mxu0 0.0
      %1976 = vmatprep.subr.mxu0 0.0
      %1977 = vmatpush1.msra.mxu0 0.0
      %1978 = vmatprep.subr.mxu0 0.0
      %1979 = vmatpush1.msra.mxu0 0.0
      %1980 = vmatprep.subr.mxu0 0.0
      %1981 = vmatpush1.msra.mxu0 0.0
      %1982 = vmatprep.subr.mxu0 0.0
      %1983 = vmatpush1.msra.mxu0 0.0
      %1984 = vmatprep.subr.mxu0 0.0
      %1985 = vmatpush1.msra.mxu0 0.0
      %1986 = vmatprep.subr.mxu0 0.0
      %1987 = vmatpush1.msra.mxu0 0.0
      %1988 = vmatprep.subr.mxu0 0.0
      %1989 = vmatpush1.msra.mxu0 0.0
      %1990 = vmatprep.subr.mxu0 0.0
      %1991 = vmatpush1.msra.mxu0 0.0
      %1992 = vmatprep.subr.mxu0 0.0
      %1993 = vmatpush1.msra.mxu0 0.0
      %1994 = vmatprep.subr.mxu0 0.0
      %1995 = vmatpush1.msra.mxu0 0.0
      %1996 = vmatprep.subr.mxu0 0.0
      %1997 = vmatpush1.msra.mxu0 0.0
      %1998 = vmatprep.subr.mxu0 0.0
      %1999 = vmatpush1.msra.mxu0 0.0
      %2000 = vmatprep.subr.mxu0 0.0
      %2001 = vmatpush1.msra.mxu0 0.0
      %2002 = vmatprep.subr.mxu0 0.0
      %2003 = vmatpush1.msra.mxu0 0.0
      %2004 = vmatprep.mubr.f32.mxu0 0.0
      %2005 = vmatmul.mubr.f32.gmra.mrb[0].mxu0 %v1868
      %v2006 = vpop.f32.mrb[0].mxu0
      %v2007 = vadd.f32 %v242, %v2006
      %v2008 = vpop.f32.mrb[0].mxu0
      %2009 = vdwg.mxu0
      %2010 = vmatprep.subr.mxu0 0.0
      %2011 = vmatpush1.msra.mxu0 %v150
      %2012 = vmatprep.subr.mxu0 0.0
      %2013 = vmatpush1.msra.mxu0 %v151
      %2014 = vmatprep.subr.mxu0 0.0
      %2015 = vmatpush1.msra.mxu0 %v152
      %2016 = vmatprep.subr.mxu0 0.0
      %2017 = vmatpush1.msra.mxu0 %v153
      %2018 = vmatprep.subr.mxu0 0.0
      %2019 = vmatpush1.msra.mxu0 0.0
      %2020 = vmatprep.subr.mxu0 0.0
      %2021 = vmatpush1.msra.mxu0 0.0
      %2022 = vmatprep.subr.mxu0 0.0
      %2023 = vmatpush1.msra.mxu0 0.0
      %2024 = vmatprep.subr.mxu0 0.0
      %2025 = vmatpush1.msra.mxu0 0.0
      %2026 = vmatprep.subr.mxu0 0.0
      %2027 = vmatpush1.msra.mxu0 0.0
      %2028 = vmatprep.subr.mxu0 0.0
      %2029 = vmatpush1.msra.mxu0 0.0
      %2030 = vmatprep.subr.mxu0 0.0
      %2031 = vmatpush1.msra.mxu0 0.0
      %2032 = vmatprep.subr.mxu0 0.0
      %2033 = vmatpush1.msra.mxu0 0.0
      %2034 = vmatprep.subr.mxu0 0.0
      %2035 = vmatpush1.msra.mxu0 0.0
      %2036 = vmatprep.subr.mxu0 0.0
      %2037 = vmatpush1.msra.mxu0 0.0
      %2038 = vmatprep.subr.mxu0 0.0
      %2039 = vmatpush1.msra.mxu0 0.0
      %2040 = vmatprep.subr.mxu0 0.0
      %2041 = vmatpush1.msra.mxu0 0.0
      %2042 = vmatprep.subr.mxu0 0.0
      %2043 = vmatpush1.msra.mxu0 0.0
      %2044 = vmatprep.subr.mxu0 0.0
      %2045 = vmatpush1.msra.mxu0 0.0
      %2046 = vmatprep.subr.mxu0 0.0
      %2047 = vmatpush1.msra.mxu0 0.0
      %2048 = vmatprep.subr.mxu0 0.0
      %2049 = vmatpush1.msra.mxu0 0.0
      %2050 = vmatprep.subr.mxu0 0.0
      %2051 = vmatpush1.msra.mxu0 0.0
      %2052 = vmatprep.subr.mxu0 0.0
      %2053 = vmatpush1.msra.mxu0 0.0
      %2054 = vmatprep.subr.mxu0 0.0
      %2055 = vmatpush1.msra.mxu0 0.0
      %2056 = vmatprep.subr.mxu0 0.0
      %2057 = vmatpush1.msra.mxu0 0.0
      %2058 = vmatprep.subr.mxu0 0.0
      %2059 = vmatpush1.msra.mxu0 0.0
      %2060 = vmatprep.subr.mxu0 0.0
      %2061 = vmatpush1.msra.mxu0 0.0
      %2062 = vmatprep.subr.mxu0 0.0
      %2063 = vmatpush1.msra.mxu0 0.0
      %2064 = vmatprep.subr.mxu0 0.0
      %2065 = vmatpush1.msra.mxu0 0.0
      %2066 = vmatprep.subr.mxu0 0.0
      %2067 = vmatpush1.msra.mxu0 0.0
      %2068 = vmatprep.subr.mxu0 0.0
      %2069 = vmatpush1.msra.mxu0 0.0
      %2070 = vmatprep.subr.mxu0 0.0
      %2071 = vmatpush1.msra.mxu0 0.0
      %2072 = vmatprep.subr.mxu0 0.0
      %2073 = vmatpush1.msra.mxu0 0.0
      %2074 = vmatprep.mubr.f32.mxu0 0.0
      %2075 = vmatmul.mubr.f32.gmra.mrb[0].mxu0 %v1868
      %v2076 = vpop.f32.mrb[0].mxu0
      %v2077 = vadd.f32 %v318, %v2076
      %v2078 = vpop.f32.mrb[0].mxu0
      %2079 = vdwg.mxu0
      %s2080 = scalar_lea.vmem [#allocation5], 56
      %v2081 = vld [vmem:[%s2080] sm:$0xff]
      %v2082 = vadd.f32 %v2081, %v1937
      %v2083 = vxor.u32 %v2082, 2147483648
      %v2084 = vmul.f32 %v2083, 1.442695
      %v2085 = vpow.pop %v2084
      %v2086 = vadd.f32 %v2085, 1.0
      %v2087 = vrcp.pop %v2086
      %v2088 = vmul.f32 1.0, %v2087
      %s2089 = scalar_lea.vmem [#allocation8], 56
      %v2090 = vld [vmem:[%s2089] sm:$0xff]
      %v2091 = vadd.f32 %v2090, %v2007
      %v2092 = vxor.u32 %v2091, 2147483648
      %v2093 = vmul.f32 %v2092, 1.442695
      %v2094 = vpow.pop %v2093
      %v2095 = vadd.f32 %v2094, 1.0
      %v2096 = vrcp.pop %v2095
      %v2097 = vmul.f32 1.0, %v2096
      %s2098 = scalar_lea.vmem [#allocation10], 56
      %v2099 = vld [vmem:[%s2098] sm:$0xff]
      %v2100 = vmul.f32 %v2088, %v2077
      %v2101 = vadd.f32 %v2099, %v2100
      %v2102 = vtanh.pop %v2101
      %v2103 = vsub.f32 1.0, %v2097
      %v2104 = vmul.f32 %v2103, %v2102
      %v2105 = vmul.f32 %v2097, %v1864
      %v2106 = vadd.f32 %v2104, %v2105
      %s2107 = scalar_lea.vmem [#allocation16], 56
      %2108 = vst.msk [vmem:[%s2107] sm:$0xff] %vm164, %v2106
      %2109 = vst.msk [vmem:[#allocation2] sm:$0xff] %vm164, %v2106
    $region73: #{tpu_custom_call.1} parent=1 // pred_fallthru
      _
    // Predicated region
    $region74: #{tpu_custom_call.1} parent=1 // pred_check
      _
    $region75: #{tpu_custom_call.1} parent=1 // pred_check_branch
      %2111 = sbr.rel (0) target = $region77
    $region76: #{tpu_custom_call.1} parent=1 // pred_region
      %s2113 = ssub.s32 1024, 1024
      %2114 = vsyncadd [#allocation7], %s2113
      %s2115 = sshll.u32 [#allocation16], 4
      %s2116 = int_to_ptr.vmem [resolvable:$true] %s2115
      %2121 = dma.vmem_to_hbm [thread:$0]  %s2116, 1024, %s10, [#allocation7], 128, 128, 8
    $region77: #{tpu_custom_call.1} parent=1 // pred_fallthru
      _
    // Predicated region
    $region78: #{tpu_custom_call.1} parent=1 // pred_check
      _
    $region79: #{tpu_custom_call.1} parent=1 // pred_check_branch
      %2123 = sbr.rel (0) target = $region81
    $region80: #{tpu_custom_call.1} parent=1 // pred_region
      %2124 = dma.done [#allocation7], 1024
    $region81: #{tpu_custom_call.1} parent=1 // pred_fallthru
      _
    %2125 = vsyncpa [#allocation6], 1
    %2126 = vsyncpa [#allocation9], 1
    %2127 = vsyncpa [#allocation12], 1
    %2128 = vsyncpa [#allocation15], 1
    %2129 = vsyncpa [#allocation7], 1

</llo_original>
